<compile_context>
chip_gen: v7x
topology: tpu7x:2x2x1
jax: 0.10.0
libtpu: 0.0.40
codegen_flags: <defaults>
</compile_context>

<pallas_src>
import jax
import jax.numpy as jnp
from jax import lax
from jax.experimental import pallas as pl
from jax.experimental.pallas import tpu as pltpu

IN_DIM = 2     # input_dim (dim = 2 in the reference script)
H1 = 64
H2 = 16
OUT_DIM = 1

LANE = 128       # lane width; batch tiles are multiples of this
LC = 128         # lane sub-tile processed per inner-loop step

PACK_ROWS = H1 + H2   # 80: rows 0..63 hold the column params, rows 64..79 hold W2
PACK_COLS = H1        # 64


def mlp_kernel(xT_ref, p_ref, oT_ref):
    # --- Parameter views: static slices of the packed buffer, loaded once. ---
    w1c0 = p_ref[0:H1, 0:1]            # [64, 1]  W1[:, 0]
    w1c1 = p_ref[0:H1, 1:2]            # [64, 1]  W1[:, 1]
    b1   = p_ref[0:H1, 2:3]            # [64, 1]
    b2   = p_ref[0:H2, 3:4]            # [16, 1]
    w3t  = p_ref[0:H2, 4:5]            # [16, 1]  W3^T
    b3   = p_ref[0:1,  5:6]            # [1, 1]
    w2   = p_ref[H1:H1 + H2, 0:H1]     # [16, 64]

    n_chunks = oT_ref.shape[-1] // LC  # static (block shape is static)

    def body(c, carry):
        off = pl.multiple_of(c * LC, LC)
        x0 = xT_ref[0:1, pl.ds(off, LC)]                        # [1, LC]
        x1 = xT_ref[1:2, pl.ds(off, LC)]                        # [1, LC]

        # Layer 1 (K=2): two VPU broadcast MACs, batch on lanes.
        h1 = jnp.maximum(w1c0 * x0 + w1c1 * x1 + b1, 0.0)       # [64, LC]

        # Layer 2 (K=64): the only MXU contraction (tiny, nowhere near bound).
        h2 = jnp.dot(w2, h1, preferred_element_type=jnp.float32) + b2
        h2 = jnp.maximum(h2, 0.0)                                # [16, LC]

        # Layer 3 (M=1, K=16): VPU multiply + sublane reduction (no 1-row MXU op).
        out = jnp.sum(w3t * h2, axis=0, keepdims=True) + b3      # [1, LC]

        # Lane-dense, 128-aligned store.
        oT_ref[:, pl.ds(off, LC)] = out.astype(oT_ref.dtype)
        return carry

    # Unrolled: short fixed trip count, and each chunk's live set
    # (h1 [64,128] = 8 vregs, h2 [16,128] = 2 vregs) fits the vreg file.
    lax.fori_loop(0, n_chunks, body, 0, unroll=True)


def mlp_forward(xT, packed_params, *, tm=2048):
    """Fused MLP forward.

    xT:            [IN_DIM, N] float32 (batch on the last / lane axis).
    packed_params: [PACK_ROWS, PACK_COLS] float32 from pack_params().
    returns:       [OUT_DIM, N] float32 (module output, feature-major).
    """
    D, N = xT.shape
    assert D == IN_DIM
    assert tm % LANE == 0 and tm >= LANE

    # Single grid step for small N (grid is a serial loop on each TensorCore);
    # fixed tm-wide tiles for large N.  Pad the batch so every block is a full
    # multiple of 128 lanes (never a ragged full-batch fallback).
    if N <= tm:
        tile = pl.cdiv(N, LANE) * LANE
    else:
        tile = tm
    n_padded = pl.cdiv(N, tile) * tile
    if n_padded != N:
        xT = jnp.pad(xT, ((0, 0), (0, n_padded - N)))
    grid = (n_padded // tile,)

    outT = pl.pallas_call(
        mlp_kernel,
        out_shape=jax.ShapeDtypeStruct((OUT_DIM, n_padded), jnp.float32),
        grid_spec=pltpu.PrefetchScalarGridSpec(
            num_scalar_prefetch=0,
            grid=grid,
            in_specs=[
                # Batch tile of x^T (batch on lanes).
                pl.BlockSpec((IN_DIM, tile), lambda i: (0, i)),
                # One packed parameter block, same block every step ->
                # stays resident in VMEM, single DMA / double-buffer.
                pl.BlockSpec((PACK_ROWS, PACK_COLS), lambda i: (0, 0)),
            ],
            out_specs=pl.BlockSpec((OUT_DIM, tile), lambda i: (0, i)),
        ),
        compiler_params=pltpu.CompilerParams(
            # Independent batch tiles.  (On v7x with very large N, CORE_PARALLEL
            # on this axis would shard tiles across both TensorCores; at small N
            # a single step is cheaper on every generation.)
            dimension_semantics=("arbitrary",) if grid[0] == 1 else ("parallel",),
        ),
    )(xT, packed_params)

    return outT if n_padded == N else outT[:, :N]


def init_params(key):
    """Deterministic synthetic parameters with nn.Linear-like init.

    PyTorch shapes: W1 [64,2], b1 [64], W2 [16,64], b2 [16], W3 [1,16], b3 [1].
    """
    ks = jax.random.split(key, 6)

    def uniform_init(k, shape, fan_in):
        bound = 1.0 / jnp.sqrt(fan_in)
        return jax.random.uniform(k, shape, jnp.float32, -bound, bound)

    return {
        "w1": uniform_init(ks[0], (H1, IN_DIM), IN_DIM),
        "b1": uniform_init(ks[1], (H1,), IN_DIM),
        "w2": uniform_init(ks[2], (H2, H1), H1),
        "b2": uniform_init(ks[3], (H2,), H1),
        "w3": uniform_init(ks[4], (OUT_DIM, H2), H2),
        "b3": uniform_init(ks[5], (OUT_DIM,), H2),
    }


def pack_params(params):
    """Pack all six parameter tensors into one [80, 64] f32 buffer (done once,
    off the hot path).  Cols 0/1 = W1 columns, 2 = b1, 3 = b2, 4 = W3^T,
    5 = b3 (top rows); rows 64..79 = W2."""
    packed = jnp.zeros((PACK_ROWS, PACK_COLS), jnp.float32)
    packed = packed.at[0:H1, 0].set(params["w1"][:, 0])
    packed = packed.at[0:H1, 1].set(params["w1"][:, 1])
    packed = packed.at[0:H1, 2].set(params["b1"])
    packed = packed.at[0:H2, 3].set(params["b2"])
    packed = packed.at[0:H2, 4].set(params["w3"][0, :])
    packed = packed.at[0:1, 5].set(params["b3"])
    packed = packed.at[H1:H1 + H2, 0:H1].set(params["w2"])
    return packed


def mlp_reference(x, params):
    """Plain-JAX reference: x [N, IN_DIM] -> [N, OUT_DIM] (correctness only)."""
    h1 = jnp.maximum(x @ params["w1"].T + params["b1"], 0.0)
    h2 = jnp.maximum(h1 @ params["w2"].T + params["b2"], 0.0)
    return h2 @ params["w3"].T + params["b3"]


if __name__ == "__main__":
    key = jax.random.PRNGKey(0)
    k_x, k_p = jax.random.split(key)

    # 2-D point cloud standing in for sample_8gaussians(n_samples=1024),
    # generated directly in the kernel's feature-major [2, N] layout so the
    # forward path never needs a transpose.
    # TODO(synk): the torch 8-gaussian sampler is data generation, not part of
    # the module forward; a deterministic random cloud at the same scale is used.
    N = 1024
    xT = jax.random.normal(k_x, (IN_DIM, N), jnp.float32) * 5.0

    params = init_params(k_p)
    packed = pack_params(params)          # one-time packing, off the hot path

    out = mlp_forward(xT, packed)         # [1, N]; single grid step at N=1024
    out = jax.block_until_ready(out)

    ref = mlp_reference(xT.T, params)     # [N, 1] (reference path only)
    assert out.shape == (OUT_DIM, N)
    assert jnp.allclose(out[0], ref[:, 0], atol=1e-4, rtol=1e-4), "mismatch vs reference"

    print("KERNEL_OK")
</pallas_src>

<mosaic_0001>
module attributes {stable_mosaic.version = 11 : i64} {
  func.func @mlp_kernel(%arg0: i32, %arg1: memref<2x1024xf32, #tpu.memory_space<vmem>>, %arg2: memref<80x64xf32, #tpu.memory_space<vmem>>, %arg3: memref<1x1024xf32, #tpu.memory_space<vmem>>) attributes {dimension_semantics = [#tpu.dimension_semantics<arbitrary>], iteration_bounds = array<i64: 1>, scalar_prefetch = 0 : i64, scratch_operands = 0 : i64, tpu.core_type = #tpu.core_type<tc>, window_params = [{transform_indices = @transform_0, window_bounds = array<i64: 2, 1024>}, {pipeline_mode = #tpu.pipeline_mode<synchronous>, transform_indices = @transform_1, window_bounds = array<i64: 80, 64>}, {transform_indices = @transform_2, window_bounds = array<i64: 1, 1024>}]} {
    %c0 = arith.constant 0 : index
    %c0_0 = arith.constant 0 : index
    %0 = vector.load %arg2[%c0, %c0_0] : memref<80x64xf32, #tpu.memory_space<vmem>>, vector<64x1xf32>
    %c0_1 = arith.constant 0 : index
    %c1 = arith.constant 1 : index
    %1 = vector.load %arg2[%c0_1, %c1] : memref<80x64xf32, #tpu.memory_space<vmem>>, vector<64x1xf32>
    %c0_2 = arith.constant 0 : index
    %c2 = arith.constant 2 : index
    %2 = vector.load %arg2[%c0_2, %c2] : memref<80x64xf32, #tpu.memory_space<vmem>>, vector<64x1xf32>
    %c0_3 = arith.constant 0 : index
    %c3 = arith.constant 3 : index
    %3 = vector.load %arg2[%c0_3, %c3] : memref<80x64xf32, #tpu.memory_space<vmem>>, vector<16x1xf32>
    %c0_4 = arith.constant 0 : index
    %c4 = arith.constant 4 : index
    %4 = vector.load %arg2[%c0_4, %c4] : memref<80x64xf32, #tpu.memory_space<vmem>>, vector<16x1xf32>
    %c0_5 = arith.constant 0 : index
    %c5 = arith.constant 5 : index
    %5 = vector.load %arg2[%c0_5, %c5] : memref<80x64xf32, #tpu.memory_space<vmem>>, vector<1x1xf32>
    %c64 = arith.constant 64 : index
    %c0_6 = arith.constant 0 : index
    %6 = vector.load %arg2[%c64, %c0_6] : memref<80x64xf32, #tpu.memory_space<vmem>>, vector<16x64xf32>
    %c0_i32 = arith.constant 0 : i32
    %c128_i32 = arith.constant 128 : i32
    %7 = arith.muli %c0_i32, %c128_i32 : i32
    %8 = tpu.assume_multiple %7, 128 : i32
    %c0_7 = arith.constant 0 : index
    %9 = arith.index_cast %8 : i32 to index
    %10 = vector.load %arg1[%c0_7, %9] : memref<2x1024xf32, #tpu.memory_space<vmem>>, vector<1x128xf32>
    %c1_8 = arith.constant 1 : index
    %11 = arith.index_cast %8 : i32 to index
    %12 = vector.load %arg1[%c1_8, %11] : memref<2x1024xf32, #tpu.memory_space<vmem>>, vector<1x128xf32>
    %13 = vector.broadcast %0 : vector<64x1xf32> to vector<64x128xf32>
    %14 = vector.broadcast %10 : vector<1x128xf32> to vector<64x128xf32>
    %15 = arith.mulf %13, %14 : vector<64x128xf32>
    %16 = vector.broadcast %1 : vector<64x1xf32> to vector<64x128xf32>
    %17 = vector.broadcast %12 : vector<1x128xf32> to vector<64x128xf32>
    %18 = arith.mulf %16, %17 : vector<64x128xf32>
    %19 = arith.addf %15, %18 : vector<64x128xf32>
    %20 = vector.broadcast %2 : vector<64x1xf32> to vector<64x128xf32>
    %21 = arith.addf %19, %20 : vector<64x128xf32>
    %cst = arith.constant 0.000000e+00 : f32
    %22 = vector.broadcast %cst : f32 to vector<64x128xf32>
    %23 = arith.maximumf %21, %22 : vector<64x128xf32>
    %cst_9 = arith.constant dense<0.000000e+00> : vector<16x128xf32>
    %24 = tpu.matmul %6, %23, %cst_9 {dimension_numbers = #tpu.dot_dimension_numbers<[1], [0], [0], [1], [0, 0, 1, 1], [], []>} : vector<16x64xf32>, vector<64x128xf32>, vector<16x128xf32> -> vector<16x128xf32>
    %25 = vector.broadcast %3 : vector<16x1xf32> to vector<16x128xf32>
    %26 = arith.addf %24, %25 : vector<16x128xf32>
    %cst_10 = arith.constant 0.000000e+00 : f32
    %27 = vector.broadcast %cst_10 : f32 to vector<16x128xf32>
    %28 = arith.maximumf %26, %27 : vector<16x128xf32>
    %29 = vector.broadcast %4 : vector<16x1xf32> to vector<16x128xf32>
    %30 = arith.mulf %29, %28 : vector<16x128xf32>
    %cst_11 = arith.constant dense<0.000000e+00> : vector<128xf32>
    %31 = vector.multi_reduction <add>, %30, %cst_11 [0] : vector<16x128xf32> to vector<128xf32>
    %32 = vector.shape_cast %31 : vector<128xf32> to vector<1x128xf32>
    %33 = vector.broadcast %5 : vector<1x1xf32> to vector<1x128xf32>
    %34 = arith.addf %32, %33 : vector<1x128xf32>
    %c0_12 = arith.constant 0 : index
    %35 = arith.index_cast %8 : i32 to index
    %36 = vector.load %arg3[%c0_12, %35] : memref<1x1024xf32, #tpu.memory_space<vmem>>, vector<1x128xf32>
    tpu.vector_store %arg3[%c0_12, %35], %34 {strides = array<i32>} : memref<1x1024xf32, #tpu.memory_space<vmem>>, vector<1x128xf32>,
    %c1_i32 = arith.constant 1 : i32
    %c128_i32_13 = arith.constant 128 : i32
    %37 = arith.muli %c1_i32, %c128_i32_13 : i32
    %38 = tpu.assume_multiple %37, 128 : i32
    %c0_14 = arith.constant 0 : index
    %39 = arith.index_cast %38 : i32 to index
    %40 = vector.load %arg1[%c0_14, %39] : memref<2x1024xf32, #tpu.memory_space<vmem>>, vector<1x128xf32>
    %c1_15 = arith.constant 1 : index
    %41 = arith.index_cast %38 : i32 to index
    %42 = vector.load %arg1[%c1_15, %41] : memref<2x1024xf32, #tpu.memory_space<vmem>>, vector<1x128xf32>
    %43 = vector.broadcast %0 : vector<64x1xf32> to vector<64x128xf32>
    %44 = vector.broadcast %40 : vector<1x128xf32> to vector<64x128xf32>
    %45 = arith.mulf %43, %44 : vector<64x128xf32>
    %46 = vector.broadcast %1 : vector<64x1xf32> to vector<64x128xf32>
    %47 = vector.broadcast %42 : vector<1x128xf32> to vector<64x128xf32>
    %48 = arith.mulf %46, %47 : vector<64x128xf32>
    %49 = arith.addf %45, %48 : vector<64x128xf32>
    %50 = vector.broadcast %2 : vector<64x1xf32> to vector<64x128xf32>
    %51 = arith.addf %49, %50 : vector<64x128xf32>
    %cst_16 = arith.constant 0.000000e+00 : f32
    %52 = vector.broadcast %cst_16 : f32 to vector<64x128xf32>
    %53 = arith.maximumf %51, %52 : vector<64x128xf32>
    %cst_17 = arith.constant dense<0.000000e+00> : vector<16x128xf32>
    %54 = tpu.matmul %6, %53, %cst_17 {dimension_numbers = #tpu.dot_dimension_numbers<[1], [0], [0], [1], [0, 0, 1, 1], [], []>} : vector<16x64xf32>, vector<64x128xf32>, vector<16x128xf32> -> vector<16x128xf32>
    %55 = vector.broadcast %3 : vector<16x1xf32> to vector<16x128xf32>
    %56 = arith.addf %54, %55 : vector<16x128xf32>
    %cst_18 = arith.constant 0.000000e+00 : f32
    %57 = vector.broadcast %cst_18 : f32 to vector<16x128xf32>
    %58 = arith.maximumf %56, %57 : vector<16x128xf32>
    %59 = vector.broadcast %4 : vector<16x1xf32> to vector<16x128xf32>
    %60 = arith.mulf %59, %58 : vector<16x128xf32>
    %cst_19 = arith.constant dense<0.000000e+00> : vector<128xf32>
    %61 = vector.multi_reduction <add>, %60, %cst_19 [0] : vector<16x128xf32> to vector<128xf32>
    %62 = vector.shape_cast %61 : vector<128xf32> to vector<1x128xf32>
    %63 = vector.broadcast %5 : vector<1x1xf32> to vector<1x128xf32>
    %64 = arith.addf %62, %63 : vector<1x128xf32>
    %c0_20 = arith.constant 0 : index
    %65 = arith.index_cast %38 : i32 to index
    %66 = vector.load %arg3[%c0_20, %65] : memref<1x1024xf32, #tpu.memory_space<vmem>>, vector<1x128xf32>
    tpu.vector_store %arg3[%c0_20, %65], %64 {strides = array<i32>} : memref<1x1024xf32, #tpu.memory_space<vmem>>, vector<1x128xf32>,
    %c2_i32 = arith.constant 2 : i32
    %c128_i32_21 = arith.constant 128 : i32
    %67 = arith.muli %c2_i32, %c128_i32_21 : i32
    %68 = tpu.assume_multiple %67, 128 : i32
    %c0_22 = arith.constant 0 : index
    %69 = arith.index_cast %68 : i32 to index
    %70 = vector.load %arg1[%c0_22, %69] : memref<2x1024xf32, #tpu.memory_space<vmem>>, vector<1x128xf32>
    %c1_23 = arith.constant 1 : index
    %71 = arith.index_cast %68 : i32 to index
    %72 = vector.load %arg1[%c1_23, %71] : memref<2x1024xf32, #tpu.memory_space<vmem>>, vector<1x128xf32>
    %73 = vector.broadcast %0 : vector<64x1xf32> to vector<64x128xf32>
    %74 = vector.broadcast %70 : vector<1x128xf32> to vector<64x128xf32>
    %75 = arith.mulf %73, %74 : vector<64x128xf32>
    %76 = vector.broadcast %1 : vector<64x1xf32> to vector<64x128xf32>
    %77 = vector.broadcast %72 : vector<1x128xf32> to vector<64x128xf32>
    %78 = arith.mulf %76, %77 : vector<64x128xf32>
    %79 = arith.addf %75, %78 : vector<64x128xf32>
    %80 = vector.broadcast %2 : vector<64x1xf32> to vector<64x128xf32>
    %81 = arith.addf %79, %80 : vector<64x128xf32>
    %cst_24 = arith.constant 0.000000e+00 : f32
    %82 = vector.broadcast %cst_24 : f32 to vector<64x128xf32>
    %83 = arith.maximumf %81, %82 : vector<64x128xf32>
    %cst_25 = arith.constant dense<0.000000e+00> : vector<16x128xf32>
    %84 = tpu.matmul %6, %83, %cst_25 {dimension_numbers = #tpu.dot_dimension_numbers<[1], [0], [0], [1], [0, 0, 1, 1], [], []>} : vector<16x64xf32>, vector<64x128xf32>, vector<16x128xf32> -> vector<16x128xf32>
    %85 = vector.broadcast %3 : vector<16x1xf32> to vector<16x128xf32>
    %86 = arith.addf %84, %85 : vector<16x128xf32>
    %cst_26 = arith.constant 0.000000e+00 : f32
    %87 = vector.broadcast %cst_26 : f32 to vector<16x128xf32>
    %88 = arith.maximumf %86, %87 : vector<16x128xf32>
    %89 = vector.broadcast %4 : vector<16x1xf32> to vector<16x128xf32>
    %90 = arith.mulf %89, %88 : vector<16x128xf32>
    %cst_27 = arith.constant dense<0.000000e+00> : vector<128xf32>
    %91 = vector.multi_reduction <add>, %90, %cst_27 [0] : vector<16x128xf32> to vector<128xf32>
    %92 = vector.shape_cast %91 : vector<128xf32> to vector<1x128xf32>
    %93 = vector.broadcast %5 : vector<1x1xf32> to vector<1x128xf32>
    %94 = arith.addf %92, %93 : vector<1x128xf32>
    %c0_28 = arith.constant 0 : index
    %95 = arith.index_cast %68 : i32 to index
    %96 = vector.load %arg3[%c0_28, %95] : memref<1x1024xf32, #tpu.memory_space<vmem>>, vector<1x128xf32>
    tpu.vector_store %arg3[%c0_28, %95], %94 {strides = array<i32>} : memref<1x1024xf32, #tpu.memory_space<vmem>>, vector<1x128xf32>,
    %c3_i32 = arith.constant 3 : i32
    %c128_i32_29 = arith.constant 128 : i32
    %97 = arith.muli %c3_i32, %c128_i32_29 : i32
    %98 = tpu.assume_multiple %97, 128 : i32
    %c0_30 = arith.constant 0 : index
    %99 = arith.index_cast %98 : i32 to index
    %100 = vector.load %arg1[%c0_30, %99] : memref<2x1024xf32, #tpu.memory_space<vmem>>, vector<1x128xf32>
    %c1_31 = arith.constant 1 : index
    %101 = arith.index_cast %98 : i32 to index
    %102 = vector.load %arg1[%c1_31, %101] : memref<2x1024xf32, #tpu.memory_space<vmem>>, vector<1x128xf32>
    %103 = vector.broadcast %0 : vector<64x1xf32> to vector<64x128xf32>
    %104 = vector.broadcast %100 : vector<1x128xf32> to vector<64x128xf32>
    %105 = arith.mulf %103, %104 : vector<64x128xf32>
    %106 = vector.broadcast %1 : vector<64x1xf32> to vector<64x128xf32>
    %107 = vector.broadcast %102 : vector<1x128xf32> to vector<64x128xf32>
    %108 = arith.mulf %106, %107 : vector<64x128xf32>
    %109 = arith.addf %105, %108 : vector<64x128xf32>
    %110 = vector.broadcast %2 : vector<64x1xf32> to vector<64x128xf32>
    %111 = arith.addf %109, %110 : vector<64x128xf32>
    %cst_32 = arith.constant 0.000000e+00 : f32
    %112 = vector.broadcast %cst_32 : f32 to vector<64x128xf32>
    %113 = arith.maximumf %111, %112 : vector<64x128xf32>
    %cst_33 = arith.constant dense<0.000000e+00> : vector<16x128xf32>
    %114 = tpu.matmul %6, %113, %cst_33 {dimension_numbers = #tpu.dot_dimension_numbers<[1], [0], [0], [1], [0, 0, 1, 1], [], []>} : vector<16x64xf32>, vector<64x128xf32>, vector<16x128xf32> -> vector<16x128xf32>
    %115 = vector.broadcast %3 : vector<16x1xf32> to vector<16x128xf32>
    %116 = arith.addf %114, %115 : vector<16x128xf32>
    %cst_34 = arith.constant 0.000000e+00 : f32
    %117 = vector.broadcast %cst_34 : f32 to vector<16x128xf32>
    %118 = arith.maximumf %116, %117 : vector<16x128xf32>
    %119 = vector.broadcast %4 : vector<16x1xf32> to vector<16x128xf32>
    %120 = arith.mulf %119, %118 : vector<16x128xf32>
    %cst_35 = arith.constant dense<0.000000e+00> : vector<128xf32>
    %121 = vector.multi_reduction <add>, %120, %cst_35 [0] : vector<16x128xf32> to vector<128xf32>
    %122 = vector.shape_cast %121 : vector<128xf32> to vector<1x128xf32>
    %123 = vector.broadcast %5 : vector<1x1xf32> to vector<1x128xf32>
    %124 = arith.addf %122, %123 : vector<1x128xf32>
    %c0_36 = arith.constant 0 : index
    %125 = arith.index_cast %98 : i32 to index
    %126 = vector.load %arg3[%c0_36, %125] : memref<1x1024xf32, #tpu.memory_space<vmem>>, vector<1x128xf32>
    tpu.vector_store %arg3[%c0_36, %125], %124 {strides = array<i32>} : memref<1x1024xf32, #tpu.memory_space<vmem>>, vector<1x128xf32>,
    %c4_i32 = arith.constant 4 : i32
    %c128_i32_37 = arith.constant 128 : i32
    %127 = arith.muli %c4_i32, %c128_i32_37 : i32
    %128 = tpu.assume_multiple %127, 128 : i32
    %c0_38 = arith.constant 0 : index
    %129 = arith.index_cast %128 : i32 to index
    %130 = vector.load %arg1[%c0_38, %129] : memref<2x1024xf32, #tpu.memory_space<vmem>>, vector<1x128xf32>
    %c1_39 = arith.constant 1 : index
    %131 = arith.index_cast %128 : i32 to index
    %132 = vector.load %arg1[%c1_39, %131] : memref<2x1024xf32, #tpu.memory_space<vmem>>, vector<1x128xf32>
    %133 = vector.broadcast %0 : vector<64x1xf32> to vector<64x128xf32>
    %134 = vector.broadcast %130 : vector<1x128xf32> to vector<64x128xf32>
    %135 = arith.mulf %133, %134 : vector<64x128xf32>
    %136 = vector.broadcast %1 : vector<64x1xf32> to vector<64x128xf32>
    %137 = vector.broadcast %132 : vector<1x128xf32> to vector<64x128xf32>
    %138 = arith.mulf %136, %137 : vector<64x128xf32>
    %139 = arith.addf %135, %138 : vector<64x128xf32>
    %140 = vector.broadcast %2 : vector<64x1xf32> to vector<64x128xf32>
    %141 = arith.addf %139, %140 : vector<64x128xf32>
    %cst_40 = arith.constant 0.000000e+00 : f32
    %142 = vector.broadcast %cst_40 : f32 to vector<64x128xf32>
    %143 = arith.maximumf %141, %142 : vector<64x128xf32>
    %cst_41 = arith.constant dense<0.000000e+00> : vector<16x128xf32>
    %144 = tpu.matmul %6, %143, %cst_41 {dimension_numbers = #tpu.dot_dimension_numbers<[1], [0], [0], [1], [0, 0, 1, 1], [], []>} : vector<16x64xf32>, vector<64x128xf32>, vector<16x128xf32> -> vector<16x128xf32>
    %145 = vector.broadcast %3 : vector<16x1xf32> to vector<16x128xf32>
    %146 = arith.addf %144, %145 : vector<16x128xf32>
    %cst_42 = arith.constant 0.000000e+00 : f32
    %147 = vector.broadcast %cst_42 : f32 to vector<16x128xf32>
    %148 = arith.maximumf %146, %147 : vector<16x128xf32>
    %149 = vector.broadcast %4 : vector<16x1xf32> to vector<16x128xf32>
    %150 = arith.mulf %149, %148 : vector<16x128xf32>
    %cst_43 = arith.constant dense<0.000000e+00> : vector<128xf32>
    %151 = vector.multi_reduction <add>, %150, %cst_43 [0] : vector<16x128xf32> to vector<128xf32>
    %152 = vector.shape_cast %151 : vector<128xf32> to vector<1x128xf32>
    %153 = vector.broadcast %5 : vector<1x1xf32> to vector<1x128xf32>
    %154 = arith.addf %152, %153 : vector<1x128xf32>
    %c0_44 = arith.constant 0 : index
    %155 = arith.index_cast %128 : i32 to index
    %156 = vector.load %arg3[%c0_44, %155] : memref<1x1024xf32, #tpu.memory_space<vmem>>, vector<1x128xf32>
    tpu.vector_store %arg3[%c0_44, %155], %154 {strides = array<i32>} : memref<1x1024xf32, #tpu.memory_space<vmem>>, vector<1x128xf32>,
    %c5_i32 = arith.constant 5 : i32
    %c128_i32_45 = arith.constant 128 : i32
    %157 = arith.muli %c5_i32, %c128_i32_45 : i32
    %158 = tpu.assume_multiple %157, 128 : i32
    %c0_46 = arith.constant 0 : index
    %159 = arith.index_cast %158 : i32 to index
    %160 = vector.load %arg1[%c0_46, %159] : memref<2x1024xf32, #tpu.memory_space<vmem>>, vector<1x128xf32>
    %c1_47 = arith.constant 1 : index
    %161 = arith.index_cast %158 : i32 to index
    %162 = vector.load %arg1[%c1_47, %161] : memref<2x1024xf32, #tpu.memory_space<vmem>>, vector<1x128xf32>
    %163 = vector.broadcast %0 : vector<64x1xf32> to vector<64x128xf32>
    %164 = vector.broadcast %160 : vector<1x128xf32> to vector<64x128xf32>
    %165 = arith.mulf %163, %164 : vector<64x128xf32>
    %166 = vector.broadcast %1 : vector<64x1xf32> to vector<64x128xf32>
    %167 = vector.broadcast %162 : vector<1x128xf32> to vector<64x128xf32>
    %168 = arith.mulf %166, %167 : vector<64x128xf32>
    %169 = arith.addf %165, %168 : vector<64x128xf32>
    %170 = vector.broadcast %2 : vector<64x1xf32> to vector<64x128xf32>
    %171 = arith.addf %169, %170 : vector<64x128xf32>
    %cst_48 = arith.constant 0.000000e+00 : f32
    %172 = vector.broadcast %cst_48 : f32 to vector<64x128xf32>
    %173 = arith.maximumf %171, %172 : vector<64x128xf32>
    %cst_49 = arith.constant dense<0.000000e+00> : vector<16x128xf32>
    %174 = tpu.matmul %6, %173, %cst_49 {dimension_numbers = #tpu.dot_dimension_numbers<[1], [0], [0], [1], [0, 0, 1, 1], [], []>} : vector<16x64xf32>, vector<64x128xf32>, vector<16x128xf32> -> vector<16x128xf32>
    %175 = vector.broadcast %3 : vector<16x1xf32> to vector<16x128xf32>
    %176 = arith.addf %174, %175 : vector<16x128xf32>
    %cst_50 = arith.constant 0.000000e+00 : f32
    %177 = vector.broadcast %cst_50 : f32 to vector<16x128xf32>
    %178 = arith.maximumf %176, %177 : vector<16x128xf32>
    %179 = vector.broadcast %4 : vector<16x1xf32> to vector<16x128xf32>
    %180 = arith.mulf %179, %178 : vector<16x128xf32>
    %cst_51 = arith.constant dense<0.000000e+00> : vector<128xf32>
    %181 = vector.multi_reduction <add>, %180, %cst_51 [0] : vector<16x128xf32> to vector<128xf32>
    %182 = vector.shape_cast %181 : vector<128xf32> to vector<1x128xf32>
    %183 = vector.broadcast %5 : vector<1x1xf32> to vector<1x128xf32>
    %184 = arith.addf %182, %183 : vector<1x128xf32>
    %c0_52 = arith.constant 0 : index
    %185 = arith.index_cast %158 : i32 to index
    %186 = vector.load %arg3[%c0_52, %185] : memref<1x1024xf32, #tpu.memory_space<vmem>>, vector<1x128xf32>
    tpu.vector_store %arg3[%c0_52, %185], %184 {strides = array<i32>} : memref<1x1024xf32, #tpu.memory_space<vmem>>, vector<1x128xf32>,
    %c6_i32 = arith.constant 6 : i32
    %c128_i32_53 = arith.constant 128 : i32
    %187 = arith.muli %c6_i32, %c128_i32_53 : i32
    %188 = tpu.assume_multiple %187, 128 : i32
    %c0_54 = arith.constant 0 : index
    %189 = arith.index_cast %188 : i32 to index
    %190 = vector.load %arg1[%c0_54, %189] : memref<2x1024xf32, #tpu.memory_space<vmem>>, vector<1x128xf32>
    %c1_55 = arith.constant 1 : index
    %191 = arith.index_cast %188 : i32 to index
    %192 = vector.load %arg1[%c1_55, %191] : memref<2x1024xf32, #tpu.memory_space<vmem>>, vector<1x128xf32>
    %193 = vector.broadcast %0 : vector<64x1xf32> to vector<64x128xf32>
    %194 = vector.broadcast %190 : vector<1x128xf32> to vector<64x128xf32>
    %195 = arith.mulf %193, %194 : vector<64x128xf32>
    %196 = vector.broadcast %1 : vector<64x1xf32> to vector<64x128xf32>
    %197 = vector.broadcast %192 : vector<1x128xf32> to vector<64x128xf32>
    %198 = arith.mulf %196, %197 : vector<64x128xf32>
    %199 = arith.addf %195, %198 : vector<64x128xf32>
    %200 = vector.broadcast %2 : vector<64x1xf32> to vector<64x128xf32>
    %201 = arith.addf %199, %200 : vector<64x128xf32>
    %cst_56 = arith.constant 0.000000e+00 : f32
    %202 = vector.broadcast %cst_56 : f32 to vector<64x128xf32>
    %203 = arith.maximumf %201, %202 : vector<64x128xf32>
    %cst_57 = arith.constant dense<0.000000e+00> : vector<16x128xf32>
    %204 = tpu.matmul %6, %203, %cst_57 {dimension_numbers = #tpu.dot_dimension_numbers<[1], [0], [0], [1], [0, 0, 1, 1], [], []>} : vector<16x64xf32>, vector<64x128xf32>, vector<16x128xf32> -> vector<16x128xf32>
    %205 = vector.broadcast %3 : vector<16x1xf32> to vector<16x128xf32>
    %206 = arith.addf %204, %205 : vector<16x128xf32>
    %cst_58 = arith.constant 0.000000e+00 : f32
    %207 = vector.broadcast %cst_58 : f32 to vector<16x128xf32>
    %208 = arith.maximumf %206, %207 : vector<16x128xf32>
    %209 = vector.broadcast %4 : vector<16x1xf32> to vector<16x128xf32>
    %210 = arith.mulf %209, %208 : vector<16x128xf32>
    %cst_59 = arith.constant dense<0.000000e+00> : vector<128xf32>
    %211 = vector.multi_reduction <add>, %210, %cst_59 [0] : vector<16x128xf32> to vector<128xf32>
    %212 = vector.shape_cast %211 : vector<128xf32> to vector<1x128xf32>
    %213 = vector.broadcast %5 : vector<1x1xf32> to vector<1x128xf32>
    %214 = arith.addf %212, %213 : vector<1x128xf32>
    %c0_60 = arith.constant 0 : index
    %215 = arith.index_cast %188 : i32 to index
    %216 = vector.load %arg3[%c0_60, %215] : memref<1x1024xf32, #tpu.memory_space<vmem>>, vector<1x128xf32>
    tpu.vector_store %arg3[%c0_60, %215], %214 {strides = array<i32>} : memref<1x1024xf32, #tpu.memory_space<vmem>>, vector<1x128xf32>,
    %c7_i32 = arith.constant 7 : i32
    %c128_i32_61 = arith.constant 128 : i32
    %217 = arith.muli %c7_i32, %c128_i32_61 : i32
    %218 = tpu.assume_multiple %217, 128 : i32
    %c0_62 = arith.constant 0 : index
    %219 = arith.index_cast %218 : i32 to index
    %220 = vector.load %arg1[%c0_62, %219] : memref<2x1024xf32, #tpu.memory_space<vmem>>, vector<1x128xf32>
    %c1_63 = arith.constant 1 : index
    %221 = arith.index_cast %218 : i32 to index
    %222 = vector.load %arg1[%c1_63, %221] : memref<2x1024xf32, #tpu.memory_space<vmem>>, vector<1x128xf32>
    %223 = vector.broadcast %0 : vector<64x1xf32> to vector<64x128xf32>
    %224 = vector.broadcast %220 : vector<1x128xf32> to vector<64x128xf32>
    %225 = arith.mulf %223, %224 : vector<64x128xf32>
    %226 = vector.broadcast %1 : vector<64x1xf32> to vector<64x128xf32>
    %227 = vector.broadcast %222 : vector<1x128xf32> to vector<64x128xf32>
    %228 = arith.mulf %226, %227 : vector<64x128xf32>
    %229 = arith.addf %225, %228 : vector<64x128xf32>
    %230 = vector.broadcast %2 : vector<64x1xf32> to vector<64x128xf32>
    %231 = arith.addf %229, %230 : vector<64x128xf32>
    %cst_64 = arith.constant 0.000000e+00 : f32
    %232 = vector.broadcast %cst_64 : f32 to vector<64x128xf32>
    %233 = arith.maximumf %231, %232 : vector<64x128xf32>
    %cst_65 = arith.constant dense<0.000000e+00> : vector<16x128xf32>
    %234 = tpu.matmul %6, %233, %cst_65 {dimension_numbers = #tpu.dot_dimension_numbers<[1], [0], [0], [1], [0, 0, 1, 1], [], []>} : vector<16x64xf32>, vector<64x128xf32>, vector<16x128xf32> -> vector<16x128xf32>
    %235 = vector.broadcast %3 : vector<16x1xf32> to vector<16x128xf32>
    %236 = arith.addf %234, %235 : vector<16x128xf32>
    %cst_66 = arith.constant 0.000000e+00 : f32
    %237 = vector.broadcast %cst_66 : f32 to vector<16x128xf32>
    %238 = arith.maximumf %236, %237 : vector<16x128xf32>
    %239 = vector.broadcast %4 : vector<16x1xf32> to vector<16x128xf32>
    %240 = arith.mulf %239, %238 : vector<16x128xf32>
    %cst_67 = arith.constant dense<0.000000e+00> : vector<128xf32>
    %241 = vector.multi_reduction <add>, %240, %cst_67 [0] : vector<16x128xf32> to vector<128xf32>
    %242 = vector.shape_cast %241 : vector<128xf32> to vector<1x128xf32>
    %243 = vector.broadcast %5 : vector<1x1xf32> to vector<1x128xf32>
    %244 = arith.addf %242, %243 : vector<1x128xf32>
    %c0_68 = arith.constant 0 : index
    %245 = arith.index_cast %218 : i32 to index
    %246 = vector.load %arg3[%c0_68, %245] : memref<1x1024xf32, #tpu.memory_space<vmem>>, vector<1x128xf32>
    tpu.vector_store %arg3[%c0_68, %245], %244 {strides = array<i32>} : memref<1x1024xf32, #tpu.memory_space<vmem>>, vector<1x128xf32>,
    %c8_i32 = arith.constant 8 : i32
    return
  }
  func.func @transform_0(%arg0: i32) -> (i32, i32) {
    %c0_i32 = arith.constant 0 : i32
    %c0_i32_0 = arith.constant 0 : i32
    return %c0_i32, %arg0 : i32, i32
  }
  func.func @transform_1(%arg0: i32) -> (i32, i32) {
    %c0_i32 = arith.constant 0 : i32
    %c0_i32_0 = arith.constant 0 : i32
    %c0_i32_1 = arith.constant 0 : i32
    return %c0_i32, %c0_i32_0 : i32, i32
  }
  func.func @transform_2(%arg0: i32) -> (i32, i32) {
    %c0_i32 = arith.constant 0 : i32
    %c0_i32_0 = arith.constant 0 : i32
    return %c0_i32, %arg0 : i32, i32
  }
}

</mosaic_0001>

<llo_original>
// kernel: tpu_custom_call.1
$region0: #{tpu_custom_call.1}
  #allocation0 [shape = 'u32[]', space=smem, size = 0x4, offset = 0x4, fixed_abs, tag = 'smem constant byte address 0x4 - core index']
  #allocation1 [shape = 'u32[144,128]{1,0:T(1,128)}', space=vmem, size = 0x12000, scoped, tag = 'internal scratch']
  %s0 = inlined_call_operand.vmem [shape: f32[2,1024], index: 0, kind: input, shape index: {}]
  %s1 = inlined_call_operand.vmem [shape: f32[80,64], index: 1, kind: input, shape index: {}]
  %s2 = inlined_call_operand.hbm [shape: f32[1,1024], index: 2, kind: output, shape index: {}]
  %s3 = sld [smem:[#allocation0]]
  $region18: #{tpu_custom_call.1} parent=0
    _
  %s5 = ssub.s32 1, %s3
  %s6 = scalar_select 0, %s5, %s3
  $region1: #{tpu_custom_call.1} parent=0
    #allocation2 [shape = 'u8[4096]{0}', space=vmem, size = 0x1000, scoped, tag = 'output window, operand 0, single buffered']
    #allocation3 [shape = 's32[1]{0}', space=sflag, size = 0x4, scoped, tag = 'scoped memory for tpu_custom_call.1']
    %7 = vsyncpa [#allocation3], 0
    // Predicated region
    $region2: #{tpu_custom_call.1} parent=1 // pred_check
      _
    $region3: #{tpu_custom_call.1} parent=1 // pred_check_branch
      %9 = sbr.rel (0) target = $region5
    $region4: #{tpu_custom_call.1} parent=1 // pred_region
      _
    $region5: #{tpu_custom_call.1} parent=1 // pred_fallthru
      _
    // Predicated region
    $region6: #{tpu_custom_call.1} parent=1 // pred_check
      _
    $region7: #{tpu_custom_call.1} parent=1 // pred_check_branch
      %11 = sbr.rel (0) target = $region9
    $region8: #{tpu_custom_call.1} parent=1 // pred_region
      _
    $region9: #{tpu_custom_call.1} parent=1 // pred_fallthru
      _
    %v12 = vld [vmem:[%s1] sm:$0xff]
    %v13 = vld [vmem:[%s1 + $0x8] sm:$0xff]
    %v14 = vld [vmem:[%s1 + $0x10] sm:$0xff]
    %v15 = vld [vmem:[%s1 + $0x18] sm:$0xff]
    %v16 = vld [vmem:[%s1 + $0x20] sm:$0xff]
    %v17 = vld [vmem:[%s1 + $0x28] sm:$0xff]
    %v18 = vld [vmem:[%s1 + $0x30] sm:$0xff]
    %v19 = vld [vmem:[%s1 + $0x38] sm:$0xff]
    %v20 = vld [vmem:[%s1] sm:$0x1]
    %v21 = vld [vmem:[%s1 + $0x40] sm:$0xff]
    %v22 = vld [vmem:[%s1 + $0x48] sm:$0xff]
    %v23 = vld [vmem:[%s0] sm:$0x1]
    %v24 = vld [vmem:[%s0 + $0x1] sm:$0x1]
    %26 = vset.pattern.permute.xlu0 0
    %27 = vperm.xlu0 %26, %v12
    %v28 = vpop.permute.xlu0 %27
    %31 = vset.pattern.permute.xlu0 0
    %32 = vperm.xlu0 %31, %v13
    %v33 = vpop.permute.xlu0 %32
    %36 = vset.pattern.permute.xlu0 0
    %37 = vperm.xlu0 %36, %v14
    %v38 = vpop.permute.xlu0 %37
    %41 = vset.pattern.permute.xlu0 0
    %42 = vperm.xlu0 %41, %v15
    %v43 = vpop.permute.xlu0 %42
    %46 = vset.pattern.permute.xlu0 0
    %47 = vperm.xlu0 %46, %v16
    %v48 = vpop.permute.xlu0 %47
    %51 = vset.pattern.permute.xlu0 0
    %52 = vperm.xlu0 %51, %v17
    %v53 = vpop.permute.xlu0 %52
    %56 = vset.pattern.permute.xlu0 0
    %57 = vperm.xlu0 %56, %v18
    %v58 = vpop.permute.xlu0 %57
    %61 = vset.pattern.permute.xlu0 0
    %62 = vperm.xlu0 %61, %v19
    %v63 = vpop.permute.xlu0 %62
    %v65 = vlaneseq
    %v66 = vshrl.u32 %v65, 7
    %v67 = vsub.s32 0, %v66
    %v68 = vrot.slane %v23, %v67
    %v69 = vmul.f32 %v28, %v68
    %v70 = vmul.f32 %v33, %v68
    %v71 = vmul.f32 %v38, %v68
    %v72 = vmul.f32 %v43, %v68
    %v73 = vmul.f32 %v48, %v68
    %v74 = vmul.f32 %v53, %v68
    %v75 = vmul.f32 %v58, %v68
    %v76 = vmul.f32 %v63, %v68
    %77 = vset.pattern.permute.xlu0 1
    %78 = vperm.xlu0 %77, %v12
    %v79 = vpop.permute.xlu0 %78
    %81 = vset.pattern.permute.xlu0 1
    %82 = vperm.xlu0 %81, %v13
    %v83 = vpop.permute.xlu0 %82
    %85 = vset.pattern.permute.xlu0 1
    %86 = vperm.xlu0 %85, %v14
    %v87 = vpop.permute.xlu0 %86
    %89 = vset.pattern.permute.xlu0 1
    %90 = vperm.xlu0 %89, %v15
    %v91 = vpop.permute.xlu0 %90
    %93 = vset.pattern.permute.xlu0 1
    %94 = vperm.xlu0 %93, %v16
    %v95 = vpop.permute.xlu0 %94
    %97 = vset.pattern.permute.xlu0 1
    %98 = vperm.xlu0 %97, %v17
    %v99 = vpop.permute.xlu0 %98
    %101 = vset.pattern.permute.xlu0 1
    %102 = vperm.xlu0 %101, %v18
    %v103 = vpop.permute.xlu0 %102
    %105 = vset.pattern.permute.xlu0 1
    %106 = vperm.xlu0 %105, %v19
    %v107 = vpop.permute.xlu0 %106
    %v109 = vlaneseq
    %v110 = vshrl.u32 %v109, 7
    %v111 = vsub.s32 0, %v110
    %v112 = vrot.slane %v24, %v111
    %v113 = vmul.f32 %v79, %v112
    %v114 = vmul.f32 %v83, %v112
    %v115 = vmul.f32 %v87, %v112
    %v116 = vmul.f32 %v91, %v112
    %v117 = vmul.f32 %v95, %v112
    %v118 = vmul.f32 %v99, %v112
    %v119 = vmul.f32 %v103, %v112
    %v120 = vmul.f32 %v107, %v112
    %v121 = vadd.f32 %v69, %v113
    %v122 = vadd.f32 %v70, %v114
    %v123 = vadd.f32 %v71, %v115
    %v124 = vadd.f32 %v72, %v116
    %v125 = vadd.f32 %v73, %v117
    %v126 = vadd.f32 %v74, %v118
    %v127 = vadd.f32 %v75, %v119
    %v128 = vadd.f32 %v76, %v120
    %129 = vset.pattern.permute.xlu0 2
    %130 = vperm.xlu0 %129, %v12
    %v131 = vpop.permute.xlu0 %130
    %133 = vset.pattern.permute.xlu0 2
    %134 = vperm.xlu0 %133, %v13
    %v135 = vpop.permute.xlu0 %134
    %137 = vset.pattern.permute.xlu0 2
    %138 = vperm.xlu0 %137, %v14
    %v139 = vpop.permute.xlu0 %138
    %141 = vset.pattern.permute.xlu0 2
    %142 = vperm.xlu0 %141, %v15
    %v143 = vpop.permute.xlu0 %142
    %145 = vset.pattern.permute.xlu0 2
    %146 = vperm.xlu0 %145, %v16
    %v147 = vpop.permute.xlu0 %146
    %149 = vset.pattern.permute.xlu0 2
    %150 = vperm.xlu0 %149, %v17
    %v151 = vpop.permute.xlu0 %150
    %153 = vset.pattern.permute.xlu0 2
    %154 = vperm.xlu0 %153, %v18
    %v155 = vpop.permute.xlu0 %154
    %157 = vset.pattern.permute.xlu0 2
    %158 = vperm.xlu0 %157, %v19
    %v159 = vpop.permute.xlu0 %158
    %v161 = vadd.f32 %v121, %v131
    %v162 = vadd.f32 %v122, %v135
    %v163 = vadd.f32 %v123, %v139
    %v164 = vadd.f32 %v124, %v143
    %v165 = vadd.f32 %v125, %v147
    %v166 = vadd.f32 %v126, %v151
    %v167 = vadd.f32 %v127, %v155
    %v168 = vadd.f32 %v128, %v159
    %v169 = vmax.f32 %v161, 0.0
    %v170 = vmax.f32 %v162, 0.0
    %v171 = vmax.f32 %v163, 0.0
    %v172 = vmax.f32 %v164, 0.0
    %v173 = vmax.f32 %v165, 0.0
    %v174 = vmax.f32 %v166, 0.0
    %v175 = vmax.f32 %v167, 0.0
    %v176 = vmax.f32 %v168, 0.0
    %177 = vset.pattern.permute.xlu0 3
    %178 = vperm.xlu0 %177, %v12
    %v179 = vpop.permute.xlu0 %178
    %181 = vset.pattern.permute.xlu0 3
    %182 = vperm.xlu0 %181, %v13
    %v183 = vpop.permute.xlu0 %182
    %vm185 = vcmask 523264
    %v187 = vsel %vm185, %v21, 0
    %v190 = vsel %vm185, %v22, 0
    %192 = vmatprep.subr.mxu0 0.0
    %193 = vmatpush1.msra.mxu0 %v169
    %194 = vmatprep.subr.mxu0 0.0
    %195 = vmatpush1.msra.mxu0 %v170
    %196 = vmatprep.subr.mxu0 0.0
    %197 = vmatpush1.msra.mxu0 %v171
    %198 = vmatprep.subr.mxu0 0.0
    %199 = vmatpush1.msra.mxu0 %v172
    %200 = vmatprep.subr.mxu0 0.0
    %201 = vmatpush1.msra.mxu0 %v173
    %202 = vmatprep.subr.mxu0 0.0
    %203 = vmatpush1.msra.mxu0 %v174
    %204 = vmatprep.subr.mxu0 0.0
    %205 = vmatpush1.msra.mxu0 %v175
    %206 = vmatprep.subr.mxu0 0.0
    %207 = vmatpush1.msra.mxu0 %v176
    %208 = vmatprep.subr.mxu0 0.0
    %209 = vmatpush1.msra.mxu0 0.0
    %210 = vmatprep.subr.mxu0 0.0
    %211 = vmatpush1.msra.mxu0 0.0
    %212 = vmatprep.subr.mxu0 0.0
    %213 = vmatpush1.msra.mxu0 0.0
    %214 = vmatprep.subr.mxu0 0.0
    %215 = vmatpush1.msra.mxu0 0.0
    %216 = vmatprep.subr.mxu0 0.0
    %217 = vmatpush1.msra.mxu0 0.0
    %218 = vmatprep.subr.mxu0 0.0
    %219 = vmatpush1.msra.mxu0 0.0
    %220 = vmatprep.subr.mxu0 0.0
    %221 = vmatpush1.msra.mxu0 0.0
    %222 = vmatprep.subr.mxu0 0.0
    %223 = vmatpush1.msra.mxu0 0.0
    %224 = vmatprep.subr.mxu0 0.0
    %225 = vmatpush1.msra.mxu0 0.0
    %226 = vmatprep.subr.mxu0 0.0
    %227 = vmatpush1.msra.mxu0 0.0
    %228 = vmatprep.subr.mxu0 0.0
    %229 = vmatpush1.msra.mxu0 0.0
    %230 = vmatprep.subr.mxu0 0.0
    %231 = vmatpush1.msra.mxu0 0.0
    %232 = vmatprep.subr.mxu0 0.0
    %233 = vmatpush1.msra.mxu0 0.0
    %234 = vmatprep.subr.mxu0 0.0
    %235 = vmatpush1.msra.mxu0 0.0
    %236 = vmatprep.subr.mxu0 0.0
    %237 = vmatpush1.msra.mxu0 0.0
    %238 = vmatprep.subr.mxu0 0.0
    %239 = vmatpush1.msra.mxu0 0.0
    %240 = vmatprep.subr.mxu0 0.0
    %241 = vmatpush1.msra.mxu0 0.0
    %242 = vmatprep.subr.mxu0 0.0
    %243 = vmatpush1.msra.mxu0 0.0
    %244 = vmatprep.subr.mxu0 0.0
    %245 = vmatpush1.msra.mxu0 0.0
    %246 = vmatprep.subr.mxu0 0.0
    %247 = vmatpush1.msra.mxu0 0.0
    %248 = vmatprep.subr.mxu0 0.0
    %249 = vmatpush1.msra.mxu0 0.0
    %250 = vmatprep.subr.mxu0 0.0
    %251 = vmatpush1.msra.mxu0 0.0
    %252 = vmatprep.subr.mxu0 0.0
    %253 = vmatpush1.msra.mxu0 0.0
    %254 = vmatprep.subr.mxu0 0.0
    %255 = vmatpush1.msra.mxu0 0.0
    %256 = vmatprep.mubr.f32.mxu0 0.0
    %257 = vmatmul.mubr.f32.gmra.mrb[0].mxu0 %v187
    %v258 = vpop.f32.mrb[0].mxu0
    %v259 = vadd.f32 %v179, %v258
    %v260 = vpop.f32.mrb[0].mxu0
    %261 = vmatprep.mubr.f32.mxu0 0.0
    %262 = vmatmul.mubr.f32.gmra.mrb[0].mxu0 %v190
    %v263 = vpop.f32.mrb[0].mxu0
    %v264 = vadd.f32 %v183, %v263
    %v265 = vpop.f32.mrb[0].mxu0
    %266 = vdwg.mxu0
    %v267 = vmax.f32 %v259, 0.0
    %v268 = vmax.f32 %v264, 0.0
    %269 = vset.pattern.permute.xlu0 4
    %270 = vperm.xlu0 %269, %v12
    %v271 = vpop.permute.xlu0 %270
    %273 = vset.pattern.permute.xlu0 4
    %274 = vperm.xlu0 %273, %v13
    %v275 = vpop.permute.xlu0 %274
    %v277 = vmul.f32 %v271, %v267
    %v278 = vmul.f32 %v275, %v268
    %v279 = vadd.f32 %v277, %v278
    %v280 = vrot.slane %v279, 4
    %v281 = vadd.f32 %v279, %v280
    %v282 = vrot.slane %v281, 2
    %v283 = vadd.f32 %v281, %v282
    %v284 = vrot.slane %v283, 1
    %v285 = vadd.f32 %v283, %v284
    %287 = vset.pattern.permute.xlu0 5
    %288 = vperm.xlu0 %287, %v20
    %v289 = vpop.permute.xlu0 %288
    %v291 = vadd.f32 %v285, %v289
    %v292 = vlaneseq
    %vm293 = vcmp.ge.s32.totalorder %v292, 0
    %vm294 = vcmp.lt.s32.totalorder %v292, 128
    %vm295 = vmand %vm293, %vm294
    %296 = vst.msk [vmem:[#allocation2] sm:$0x1] %vm295, %v291
    %s297 = scalar_lea.vmem %s0, 2
    %v298 = vld [vmem:[%s297] sm:$0x1]
    %v299 = vld [vmem:[%s297 + $0x1] sm:$0x1]
    %v300 = vlaneseq
    %v301 = vshrl.u32 %v300, 7
    %v302 = vsub.s32 0, %v301
    %v303 = vrot.slane %v298, %v302
    %v304 = vmul.f32 %v28, %v303
    %v305 = vmul.f32 %v33, %v303
    %v306 = vmul.f32 %v38, %v303
    %v307 = vmul.f32 %v43, %v303
    %v308 = vmul.f32 %v48, %v303
    %v309 = vmul.f32 %v53, %v303
    %v310 = vmul.f32 %v58, %v303
    %v311 = vmul.f32 %v63, %v303
    %v312 = vlaneseq
    %v313 = vshrl.u32 %v312, 7
    %v314 = vsub.s32 0, %v313
    %v315 = vrot.slane %v299, %v314
    %v316 = vmul.f32 %v79, %v315
    %v317 = vmul.f32 %v83, %v315
    %v318 = vmul.f32 %v87, %v315
    %v319 = vmul.f32 %v91, %v315
    %v320 = vmul.f32 %v95, %v315
    %v321 = vmul.f32 %v99, %v315
    %v322 = vmul.f32 %v103, %v315
    %v323 = vmul.f32 %v107, %v315
    %v324 = vadd.f32 %v304, %v316
    %v325 = vadd.f32 %v305, %v317
    %v326 = vadd.f32 %v306, %v318
    %v327 = vadd.f32 %v307, %v319
    %v328 = vadd.f32 %v308, %v320
    %v329 = vadd.f32 %v309, %v321
    %v330 = vadd.f32 %v310, %v322
    %v331 = vadd.f32 %v311, %v323
    %v332 = vadd.f32 %v324, %v131
    %v333 = vadd.f32 %v325, %v135
    %v334 = vadd.f32 %v326, %v139
    %v335 = vadd.f32 %v327, %v143
    %v336 = vadd.f32 %v328, %v147
    %v337 = vadd.f32 %v329, %v151
    %v338 = vadd.f32 %v330, %v155
    %v339 = vadd.f32 %v331, %v159
    %v340 = vmax.f32 %v332, 0.0
    %v341 = vmax.f32 %v333, 0.0
    %v342 = vmax.f32 %v334, 0.0
    %v343 = vmax.f32 %v335, 0.0
    %v344 = vmax.f32 %v336, 0.0
    %v345 = vmax.f32 %v337, 0.0
    %v346 = vmax.f32 %v338, 0.0
    %v347 = vmax.f32 %v339, 0.0
    %348 = vmatprep.subr.mxu0 0.0
    %349 = vmatpush1.msra.mxu0 %v340
    %350 = vmatprep.subr.mxu0 0.0
    %351 = vmatpush1.msra.mxu0 %v341
    %352 = vmatprep.subr.mxu0 0.0
    %353 = vmatpush1.msra.mxu0 %v342
    %354 = vmatprep.subr.mxu0 0.0
    %355 = vmatpush1.msra.mxu0 %v343
    %356 = vmatprep.subr.mxu0 0.0
    %357 = vmatpush1.msra.mxu0 %v344
    %358 = vmatprep.subr.mxu0 0.0
    %359 = vmatpush1.msra.mxu0 %v345
    %360 = vmatprep.subr.mxu0 0.0
    %361 = vmatpush1.msra.mxu0 %v346
    %362 = vmatprep.subr.mxu0 0.0
    %363 = vmatpush1.msra.mxu0 %v347
    %364 = vmatprep.subr.mxu0 0.0
    %365 = vmatpush1.msra.mxu0 0.0
    %366 = vmatprep.subr.mxu0 0.0
    %367 = vmatpush1.msra.mxu0 0.0
    %368 = vmatprep.subr.mxu0 0.0
    %369 = vmatpush1.msra.mxu0 0.0
    %370 = vmatprep.subr.mxu0 0.0
    %371 = vmatpush1.msra.mxu0 0.0
    %372 = vmatprep.subr.mxu0 0.0
    %373 = vmatpush1.msra.mxu0 0.0
    %374 = vmatprep.subr.mxu0 0.0
    %375 = vmatpush1.msra.mxu0 0.0
    %376 = vmatprep.subr.mxu0 0.0
    %377 = vmatpush1.msra.mxu0 0.0
    %378 = vmatprep.subr.mxu0 0.0
    %379 = vmatpush1.msra.mxu0 0.0
    %380 = vmatprep.subr.mxu0 0.0
    %381 = vmatpush1.msra.mxu0 0.0
    %382 = vmatprep.subr.mxu0 0.0
    %383 = vmatpush1.msra.mxu0 0.0
    %384 = vmatprep.subr.mxu0 0.0
    %385 = vmatpush1.msra.mxu0 0.0
    %386 = vmatprep.subr.mxu0 0.0
    %387 = vmatpush1.msra.mxu0 0.0
    %388 = vmatprep.subr.mxu0 0.0
    %389 = vmatpush1.msra.mxu0 0.0
    %390 = vmatprep.subr.mxu0 0.0
    %391 = vmatpush1.msra.mxu0 0.0
    %392 = vmatprep.subr.mxu0 0.0
    %393 = vmatpush1.msra.mxu0 0.0
    %394 = vmatprep.subr.mxu0 0.0
    %395 = vmatpush1.msra.mxu0 0.0
    %396 = vmatprep.subr.mxu0 0.0
    %397 = vmatpush1.msra.mxu0 0.0
    %398 = vmatprep.subr.mxu0 0.0
    %399 = vmatpush1.msra.mxu0 0.0
    %400 = vmatprep.subr.mxu0 0.0
    %401 = vmatpush1.msra.mxu0 0.0
    %402 = vmatprep.subr.mxu0 0.0
    %403 = vmatpush1.msra.mxu0 0.0
    %404 = vmatprep.subr.mxu0 0.0
    %405 = vmatpush1.msra.mxu0 0.0
    %406 = vmatprep.subr.mxu0 0.0
    %407 = vmatpush1.msra.mxu0 0.0
    %408 = vmatprep.subr.mxu0 0.0
    %409 = vmatpush1.msra.mxu0 0.0
    %410 = vmatprep.subr.mxu0 0.0
    %411 = vmatpush1.msra.mxu0 0.0
    %412 = vmatprep.mubr.f32.mxu0 0.0
    %413 = vmatmul.mubr.f32.gmra.mrb[0].mxu0 %v187
    %v414 = vpop.f32.mrb[0].mxu0
    %v415 = vadd.f32 %v179, %v414
    %v416 = vpop.f32.mrb[0].mxu0
    %417 = vmatprep.mubr.f32.mxu0 0.0
    %418 = vmatmul.mubr.f32.gmra.mrb[0].mxu0 %v190
    %v419 = vpop.f32.mrb[0].mxu0
    %v420 = vadd.f32 %v183, %v419
    %v421 = vpop.f32.mrb[0].mxu0
    %422 = vdwg.mxu0
    %v423 = vmax.f32 %v415, 0.0
    %v424 = vmax.f32 %v420, 0.0
    %v425 = vmul.f32 %v271, %v423
    %v426 = vmul.f32 %v275, %v424
    %v427 = vadd.f32 %v425, %v426
    %v428 = vrot.slane %v427, 4
    %v429 = vadd.f32 %v427, %v428
    %v430 = vrot.slane %v429, 2
    %v431 = vadd.f32 %v429, %v430
    %v432 = vrot.slane %v431, 1
    %v433 = vadd.f32 %v431, %v432
    %v434 = vadd.f32 %v433, %v289
    %s435 = scalar_lea.vmem [#allocation2], 1
    %436 = vst.msk [vmem:[%s435] sm:$0x1] %vm295, %v434
    %s437 = scalar_lea.vmem %s0, 4
    %v438 = vld [vmem:[%s437] sm:$0x1]
    %v439 = vld [vmem:[%s437 + $0x1] sm:$0x1]
    %v440 = vlaneseq
    %v441 = vshrl.u32 %v440, 7
    %v442 = vsub.s32 0, %v441
    %v443 = vrot.slane %v438, %v442
    %v444 = vmul.f32 %v28, %v443
    %v445 = vmul.f32 %v33, %v443
    %v446 = vmul.f32 %v38, %v443
    %v447 = vmul.f32 %v43, %v443
    %v448 = vmul.f32 %v48, %v443
    %v449 = vmul.f32 %v53, %v443
    %v450 = vmul.f32 %v58, %v443
    %v451 = vmul.f32 %v63, %v443
    %v452 = vlaneseq
    %v453 = vshrl.u32 %v452, 7
    %v454 = vsub.s32 0, %v453
    %v455 = vrot.slane %v439, %v454
    %v456 = vmul.f32 %v79, %v455
    %v457 = vmul.f32 %v83, %v455
    %v458 = vmul.f32 %v87, %v455
    %v459 = vmul.f32 %v91, %v455
    %v460 = vmul.f32 %v95, %v455
    %v461 = vmul.f32 %v99, %v455
    %v462 = vmul.f32 %v103, %v455
    %v463 = vmul.f32 %v107, %v455
    %v464 = vadd.f32 %v444, %v456
    %v465 = vadd.f32 %v445, %v457
    %v466 = vadd.f32 %v446, %v458
    %v467 = vadd.f32 %v447, %v459
    %v468 = vadd.f32 %v448, %v460
    %v469 = vadd.f32 %v449, %v461
    %v470 = vadd.f32 %v450, %v462
    %v471 = vadd.f32 %v451, %v463
    %v472 = vadd.f32 %v464, %v131
    %v473 = vadd.f32 %v465, %v135
    %v474 = vadd.f32 %v466, %v139
    %v475 = vadd.f32 %v467, %v143
    %v476 = vadd.f32 %v468, %v147
    %v477 = vadd.f32 %v469, %v151
    %v478 = vadd.f32 %v470, %v155
    %v479 = vadd.f32 %v471, %v159
    %v480 = vmax.f32 %v472, 0.0
    %v481 = vmax.f32 %v473, 0.0
    %v482 = vmax.f32 %v474, 0.0
    %v483 = vmax.f32 %v475, 0.0
    %v484 = vmax.f32 %v476, 0.0
    %v485 = vmax.f32 %v477, 0.0
    %v486 = vmax.f32 %v478, 0.0
    %v487 = vmax.f32 %v479, 0.0
    %488 = vmatprep.subr.mxu0 0.0
    %489 = vmatpush1.msra.mxu0 %v480
    %490 = vmatprep.subr.mxu0 0.0
    %491 = vmatpush1.msra.mxu0 %v481
    %492 = vmatprep.subr.mxu0 0.0
    %493 = vmatpush1.msra.mxu0 %v482
    %494 = vmatprep.subr.mxu0 0.0
    %495 = vmatpush1.msra.mxu0 %v483
    %496 = vmatprep.subr.mxu0 0.0
    %497 = vmatpush1.msra.mxu0 %v484
    %498 = vmatprep.subr.mxu0 0.0
    %499 = vmatpush1.msra.mxu0 %v485
    %500 = vmatprep.subr.mxu0 0.0
    %501 = vmatpush1.msra.mxu0 %v486
    %502 = vmatprep.subr.mxu0 0.0
    %503 = vmatpush1.msra.mxu0 %v487
    %504 = vmatprep.subr.mxu0 0.0
    %505 = vmatpush1.msra.mxu0 0.0
    %506 = vmatprep.subr.mxu0 0.0
    %507 = vmatpush1.msra.mxu0 0.0
    %508 = vmatprep.subr.mxu0 0.0
    %509 = vmatpush1.msra.mxu0 0.0
    %510 = vmatprep.subr.mxu0 0.0
    %511 = vmatpush1.msra.mxu0 0.0
    %512 = vmatprep.subr.mxu0 0.0
    %513 = vmatpush1.msra.mxu0 0.0
    %514 = vmatprep.subr.mxu0 0.0
    %515 = vmatpush1.msra.mxu0 0.0
    %516 = vmatprep.subr.mxu0 0.0
    %517 = vmatpush1.msra.mxu0 0.0
    %518 = vmatprep.subr.mxu0 0.0
    %519 = vmatpush1.msra.mxu0 0.0
    %520 = vmatprep.subr.mxu0 0.0
    %521 = vmatpush1.msra.mxu0 0.0
    %522 = vmatprep.subr.mxu0 0.0
    %523 = vmatpush1.msra.mxu0 0.0
    %524 = vmatprep.subr.mxu0 0.0
    %525 = vmatpush1.msra.mxu0 0.0
    %526 = vmatprep.subr.mxu0 0.0
    %527 = vmatpush1.msra.mxu0 0.0
    %528 = vmatprep.subr.mxu0 0.0
    %529 = vmatpush1.msra.mxu0 0.0
    %530 = vmatprep.subr.mxu0 0.0
    %531 = vmatpush1.msra.mxu0 0.0
    %532 = vmatprep.subr.mxu0 0.0
    %533 = vmatpush1.msra.mxu0 0.0
    %534 = vmatprep.subr.mxu0 0.0
    %535 = vmatpush1.msra.mxu0 0.0
    %536 = vmatprep.subr.mxu0 0.0
    %537 = vmatpush1.msra.mxu0 0.0
    %538 = vmatprep.subr.mxu0 0.0
    %539 = vmatpush1.msra.mxu0 0.0
    %540 = vmatprep.subr.mxu0 0.0
    %541 = vmatpush1.msra.mxu0 0.0
    %542 = vmatprep.subr.mxu0 0.0
    %543 = vmatpush1.msra.mxu0 0.0
    %544 = vmatprep.subr.mxu0 0.0
    %545 = vmatpush1.msra.mxu0 0.0
    %546 = vmatprep.subr.mxu0 0.0
    %547 = vmatpush1.msra.mxu0 0.0
    %548 = vmatprep.subr.mxu0 0.0
    %549 = vmatpush1.msra.mxu0 0.0
    %550 = vmatprep.subr.mxu0 0.0
    %551 = vmatpush1.msra.mxu0 0.0
    %552 = vmatprep.mubr.f32.mxu0 0.0
    %553 = vmatmul.mubr.f32.gmra.mrb[0].mxu0 %v187
    %v554 = vpop.f32.mrb[0].mxu0
    %v555 = vadd.f32 %v179, %v554
    %v556 = vpop.f32.mrb[0].mxu0
    %557 = vmatprep.mubr.f32.mxu0 0.0
    %558 = vmatmul.mubr.f32.gmra.mrb[0].mxu0 %v190
    %v559 = vpop.f32.mrb[0].mxu0
    %v560 = vadd.f32 %v183, %v559
    %v561 = vpop.f32.mrb[0].mxu0
    %562 = vdwg.mxu0
    %v563 = vmax.f32 %v555, 0.0
    %v564 = vmax.f32 %v560, 0.0
    %v565 = vmul.f32 %v271, %v563
    %v566 = vmul.f32 %v275, %v564
    %v567 = vadd.f32 %v565, %v566
    %v568 = vrot.slane %v567, 4
    %v569 = vadd.f32 %v567, %v568
    %v570 = vrot.slane %v569, 2
    %v571 = vadd.f32 %v569, %v570
    %v572 = vrot.slane %v571, 1
    %v573 = vadd.f32 %v571, %v572
    %v574 = vadd.f32 %v573, %v289
    %s575 = scalar_lea.vmem [#allocation2], 2
    %576 = vst.msk [vmem:[%s575] sm:$0x1] %vm295, %v574
    %s577 = scalar_lea.vmem %s0, 6
    %v578 = vld [vmem:[%s577] sm:$0x1]
    %v579 = vld [vmem:[%s577 + $0x1] sm:$0x1]
    %v580 = vlaneseq
    %v581 = vshrl.u32 %v580, 7
    %v582 = vsub.s32 0, %v581
    %v583 = vrot.slane %v578, %v582
    %v584 = vmul.f32 %v28, %v583
    %v585 = vmul.f32 %v33, %v583
    %v586 = vmul.f32 %v38, %v583
    %v587 = vmul.f32 %v43, %v583
    %v588 = vmul.f32 %v48, %v583
    %v589 = vmul.f32 %v53, %v583
    %v590 = vmul.f32 %v58, %v583
    %v591 = vmul.f32 %v63, %v583
    %v592 = vlaneseq
    %v593 = vshrl.u32 %v592, 7
    %v594 = vsub.s32 0, %v593
    %v595 = vrot.slane %v579, %v594
    %v596 = vmul.f32 %v79, %v595
    %v597 = vmul.f32 %v83, %v595
    %v598 = vmul.f32 %v87, %v595
    %v599 = vmul.f32 %v91, %v595
    %v600 = vmul.f32 %v95, %v595
    %v601 = vmul.f32 %v99, %v595
    %v602 = vmul.f32 %v103, %v595
    %v603 = vmul.f32 %v107, %v595
    %v604 = vadd.f32 %v584, %v596
    %v605 = vadd.f32 %v585, %v597
    %v606 = vadd.f32 %v586, %v598
    %v607 = vadd.f32 %v587, %v599
    %v608 = vadd.f32 %v588, %v600
    %v609 = vadd.f32 %v589, %v601
    %v610 = vadd.f32 %v590, %v602
    %v611 = vadd.f32 %v591, %v603
    %v612 = vadd.f32 %v604, %v131
    %v613 = vadd.f32 %v605, %v135
    %v614 = vadd.f32 %v606, %v139
    %v615 = vadd.f32 %v607, %v143
    %v616 = vadd.f32 %v608, %v147
    %v617 = vadd.f32 %v609, %v151
    %v618 = vadd.f32 %v610, %v155
    %v619 = vadd.f32 %v611, %v159
    %v620 = vmax.f32 %v612, 0.0
    %v621 = vmax.f32 %v613, 0.0
    %v622 = vmax.f32 %v614, 0.0
    %v623 = vmax.f32 %v615, 0.0
    %v624 = vmax.f32 %v616, 0.0
    %v625 = vmax.f32 %v617, 0.0
    %v626 = vmax.f32 %v618, 0.0
    %v627 = vmax.f32 %v619, 0.0
    %628 = vmatprep.subr.mxu0 0.0
    %629 = vmatpush1.msra.mxu0 %v620
    %630 = vmatprep.subr.mxu0 0.0
    %631 = vmatpush1.msra.mxu0 %v621
    %632 = vmatprep.subr.mxu0 0.0
    %633 = vmatpush1.msra.mxu0 %v622
    %634 = vmatprep.subr.mxu0 0.0
    %635 = vmatpush1.msra.mxu0 %v623
    %636 = vmatprep.subr.mxu0 0.0
    %637 = vmatpush1.msra.mxu0 %v624
    %638 = vmatprep.subr.mxu0 0.0
    %639 = vmatpush1.msra.mxu0 %v625
    %640 = vmatprep.subr.mxu0 0.0
    %641 = vmatpush1.msra.mxu0 %v626
    %642 = vmatprep.subr.mxu0 0.0
    %643 = vmatpush1.msra.mxu0 %v627
    %644 = vmatprep.subr.mxu0 0.0
    %645 = vmatpush1.msra.mxu0 0.0
    %646 = vmatprep.subr.mxu0 0.0
    %647 = vmatpush1.msra.mxu0 0.0
    %648 = vmatprep.subr.mxu0 0.0
    %649 = vmatpush1.msra.mxu0 0.0
    %650 = vmatprep.subr.mxu0 0.0
    %651 = vmatpush1.msra.mxu0 0.0
    %652 = vmatprep.subr.mxu0 0.0
    %653 = vmatpush1.msra.mxu0 0.0
    %654 = vmatprep.subr.mxu0 0.0
    %655 = vmatpush1.msra.mxu0 0.0
    %656 = vmatprep.subr.mxu0 0.0
    %657 = vmatpush1.msra.mxu0 0.0
    %658 = vmatprep.subr.mxu0 0.0
    %659 = vmatpush1.msra.mxu0 0.0
    %660 = vmatprep.subr.mxu0 0.0
    %661 = vmatpush1.msra.mxu0 0.0
    %662 = vmatprep.subr.mxu0 0.0
    %663 = vmatpush1.msra.mxu0 0.0
    %664 = vmatprep.subr.mxu0 0.0
    %665 = vmatpush1.msra.mxu0 0.0
    %666 = vmatprep.subr.mxu0 0.0
    %667 = vmatpush1.msra.mxu0 0.0
    %668 = vmatprep.subr.mxu0 0.0
    %669 = vmatpush1.msra.mxu0 0.0
    %670 = vmatprep.subr.mxu0 0.0
    %671 = vmatpush1.msra.mxu0 0.0
    %672 = vmatprep.subr.mxu0 0.0
    %673 = vmatpush1.msra.mxu0 0.0
    %674 = vmatprep.subr.mxu0 0.0
    %675 = vmatpush1.msra.mxu0 0.0
    %676 = vmatprep.subr.mxu0 0.0
    %677 = vmatpush1.msra.mxu0 0.0
    %678 = vmatprep.subr.mxu0 0.0
    %679 = vmatpush1.msra.mxu0 0.0
    %680 = vmatprep.subr.mxu0 0.0
    %681 = vmatpush1.msra.mxu0 0.0
    %682 = vmatprep.subr.mxu0 0.0
    %683 = vmatpush1.msra.mxu0 0.0
    %684 = vmatprep.subr.mxu0 0.0
    %685 = vmatpush1.msra.mxu0 0.0
    %686 = vmatprep.subr.mxu0 0.0
    %687 = vmatpush1.msra.mxu0 0.0
    %688 = vmatprep.subr.mxu0 0.0
    %689 = vmatpush1.msra.mxu0 0.0
    %690 = vmatprep.subr.mxu0 0.0
    %691 = vmatpush1.msra.mxu0 0.0
    %692 = vmatprep.mubr.f32.mxu0 0.0
    %693 = vmatmul.mubr.f32.gmra.mrb[0].mxu0 %v187
    %v694 = vpop.f32.mrb[0].mxu0
    %v695 = vadd.f32 %v179, %v694
    %v696 = vpop.f32.mrb[0].mxu0
    %697 = vmatprep.mubr.f32.mxu0 0.0
    %698 = vmatmul.mubr.f32.gmra.mrb[0].mxu0 %v190
    %v699 = vpop.f32.mrb[0].mxu0
    %v700 = vadd.f32 %v183, %v699
    %v701 = vpop.f32.mrb[0].mxu0
    %702 = vdwg.mxu0
    %v703 = vmax.f32 %v695, 0.0
    %v704 = vmax.f32 %v700, 0.0
    %v705 = vmul.f32 %v271, %v703
    %v706 = vmul.f32 %v275, %v704
    %v707 = vadd.f32 %v705, %v706
    %v708 = vrot.slane %v707, 4
    %v709 = vadd.f32 %v707, %v708
    %v710 = vrot.slane %v709, 2
    %v711 = vadd.f32 %v709, %v710
    %v712 = vrot.slane %v711, 1
    %v713 = vadd.f32 %v711, %v712
    %v714 = vadd.f32 %v713, %v289
    %s715 = scalar_lea.vmem [#allocation2], 3
    %716 = vst.msk [vmem:[%s715] sm:$0x1] %vm295, %v714
    %s717 = scalar_lea.vmem %s0, 8
    %v718 = vld [vmem:[%s717] sm:$0x1]
    %v719 = vld [vmem:[%s717 + $0x1] sm:$0x1]
    %v720 = vlaneseq
    %v721 = vshrl.u32 %v720, 7
    %v722 = vsub.s32 0, %v721
    %v723 = vrot.slane %v718, %v722
    %v724 = vmul.f32 %v28, %v723
    %v725 = vmul.f32 %v33, %v723
    %v726 = vmul.f32 %v38, %v723
    %v727 = vmul.f32 %v43, %v723
    %v728 = vmul.f32 %v48, %v723
    %v729 = vmul.f32 %v53, %v723
    %v730 = vmul.f32 %v58, %v723
    %v731 = vmul.f32 %v63, %v723
    %v732 = vlaneseq
    %v733 = vshrl.u32 %v732, 7
    %v734 = vsub.s32 0, %v733
    %v735 = vrot.slane %v719, %v734
    %v736 = vmul.f32 %v79, %v735
    %v737 = vmul.f32 %v83, %v735
    %v738 = vmul.f32 %v87, %v735
    %v739 = vmul.f32 %v91, %v735
    %v740 = vmul.f32 %v95, %v735
    %v741 = vmul.f32 %v99, %v735
    %v742 = vmul.f32 %v103, %v735
    %v743 = vmul.f32 %v107, %v735
    %v744 = vadd.f32 %v724, %v736
    %v745 = vadd.f32 %v725, %v737
    %v746 = vadd.f32 %v726, %v738
    %v747 = vadd.f32 %v727, %v739
    %v748 = vadd.f32 %v728, %v740
    %v749 = vadd.f32 %v729, %v741
    %v750 = vadd.f32 %v730, %v742
    %v751 = vadd.f32 %v731, %v743
    %v752 = vadd.f32 %v744, %v131
    %v753 = vadd.f32 %v745, %v135
    %v754 = vadd.f32 %v746, %v139
    %v755 = vadd.f32 %v747, %v143
    %v756 = vadd.f32 %v748, %v147
    %v757 = vadd.f32 %v749, %v151
    %v758 = vadd.f32 %v750, %v155
    %v759 = vadd.f32 %v751, %v159
    %v760 = vmax.f32 %v752, 0.0
    %v761 = vmax.f32 %v753, 0.0
    %v762 = vmax.f32 %v754, 0.0
    %v763 = vmax.f32 %v755, 0.0
    %v764 = vmax.f32 %v756, 0.0
    %v765 = vmax.f32 %v757, 0.0
    %v766 = vmax.f32 %v758, 0.0
    %v767 = vmax.f32 %v759, 0.0
    %768 = vmatprep.subr.mxu0 0.0
    %769 = vmatpush1.msra.mxu0 %v760
    %770 = vmatprep.subr.mxu0 0.0
    %771 = vmatpush1.msra.mxu0 %v761
    %772 = vmatprep.subr.mxu0 0.0
    %773 = vmatpush1.msra.mxu0 %v762
    %774 = vmatprep.subr.mxu0 0.0
    %775 = vmatpush1.msra.mxu0 %v763
    %776 = vmatprep.subr.mxu0 0.0
    %777 = vmatpush1.msra.mxu0 %v764
    %778 = vmatprep.subr.mxu0 0.0
    %779 = vmatpush1.msra.mxu0 %v765
    %780 = vmatprep.subr.mxu0 0.0
    %781 = vmatpush1.msra.mxu0 %v766
    %782 = vmatprep.subr.mxu0 0.0
    %783 = vmatpush1.msra.mxu0 %v767
    %784 = vmatprep.subr.mxu0 0.0
    %785 = vmatpush1.msra.mxu0 0.0
    %786 = vmatprep.subr.mxu0 0.0
    %787 = vmatpush1.msra.mxu0 0.0
    %788 = vmatprep.subr.mxu0 0.0
    %789 = vmatpush1.msra.mxu0 0.0
    %790 = vmatprep.subr.mxu0 0.0
    %791 = vmatpush1.msra.mxu0 0.0
    %792 = vmatprep.subr.mxu0 0.0
    %793 = vmatpush1.msra.mxu0 0.0
    %794 = vmatprep.subr.mxu0 0.0
    %795 = vmatpush1.msra.mxu0 0.0
    %796 = vmatprep.subr.mxu0 0.0
    %797 = vmatpush1.msra.mxu0 0.0
    %798 = vmatprep.subr.mxu0 0.0
    %799 = vmatpush1.msra.mxu0 0.0
    %800 = vmatprep.subr.mxu0 0.0
    %801 = vmatpush1.msra.mxu0 0.0
    %802 = vmatprep.subr.mxu0 0.0
    %803 = vmatpush1.msra.mxu0 0.0
    %804 = vmatprep.subr.mxu0 0.0
    %805 = vmatpush1.msra.mxu0 0.0
    %806 = vmatprep.subr.mxu0 0.0
    %807 = vmatpush1.msra.mxu0 0.0
    %808 = vmatprep.subr.mxu0 0.0
    %809 = vmatpush1.msra.mxu0 0.0
    %810 = vmatprep.subr.mxu0 0.0
    %811 = vmatpush1.msra.mxu0 0.0
    %812 = vmatprep.subr.mxu0 0.0
    %813 = vmatpush1.msra.mxu0 0.0
    %814 = vmatprep.subr.mxu0 0.0
    %815 = vmatpush1.msra.mxu0 0.0
    %816 = vmatprep.subr.mxu0 0.0
    %817 = vmatpush1.msra.mxu0 0.0
    %818 = vmatprep.subr.mxu0 0.0
    %819 = vmatpush1.msra.mxu0 0.0
    %820 = vmatprep.subr.mxu0 0.0
    %821 = vmatpush1.msra.mxu0 0.0
    %822 = vmatprep.subr.mxu0 0.0
    %823 = vmatpush1.msra.mxu0 0.0
    %824 = vmatprep.subr.mxu0 0.0
    %825 = vmatpush1.msra.mxu0 0.0
    %826 = vmatprep.subr.mxu0 0.0
    %827 = vmatpush1.msra.mxu0 0.0
    %828 = vmatprep.subr.mxu0 0.0
    %829 = vmatpush1.msra.mxu0 0.0
    %830 = vmatprep.subr.mxu0 0.0
    %831 = vmatpush1.msra.mxu0 0.0
    %832 = vmatprep.mubr.f32.mxu0 0.0
    %833 = vmatmul.mubr.f32.gmra.mrb[0].mxu0 %v187
    %v834 = vpop.f32.mrb[0].mxu0
    %v835 = vadd.f32 %v179, %v834
    %v836 = vpop.f32.mrb[0].mxu0
    %837 = vmatprep.mubr.f32.mxu0 0.0
    %838 = vmatmul.mubr.f32.gmra.mrb[0].mxu0 %v190
    %v839 = vpop.f32.mrb[0].mxu0
    %v840 = vadd.f32 %v183, %v839
    %v841 = vpop.f32.mrb[0].mxu0
    %842 = vdwg.mxu0
    %v843 = vmax.f32 %v835, 0.0
    %v844 = vmax.f32 %v840, 0.0
    %v845 = vmul.f32 %v271, %v843
    %v846 = vmul.f32 %v275, %v844
    %v847 = vadd.f32 %v845, %v846
    %v848 = vrot.slane %v847, 4
    %v849 = vadd.f32 %v847, %v848
    %v850 = vrot.slane %v849, 2
    %v851 = vadd.f32 %v849, %v850
    %v852 = vrot.slane %v851, 1
    %v853 = vadd.f32 %v851, %v852
    %v854 = vadd.f32 %v853, %v289
    %s855 = scalar_lea.vmem [#allocation2], 4
    %856 = vst.msk [vmem:[%s855] sm:$0x1] %vm295, %v854
    %s857 = scalar_lea.vmem %s0, 10
    %v858 = vld [vmem:[%s857] sm:$0x1]
    %v859 = vld [vmem:[%s857 + $0x1] sm:$0x1]
    %v860 = vlaneseq
    %v861 = vshrl.u32 %v860, 7
    %v862 = vsub.s32 0, %v861
    %v863 = vrot.slane %v858, %v862
    %v864 = vmul.f32 %v28, %v863
    %v865 = vmul.f32 %v33, %v863
    %v866 = vmul.f32 %v38, %v863
    %v867 = vmul.f32 %v43, %v863
    %v868 = vmul.f32 %v48, %v863
    %v869 = vmul.f32 %v53, %v863
    %v870 = vmul.f32 %v58, %v863
    %v871 = vmul.f32 %v63, %v863
    %v872 = vlaneseq
    %v873 = vshrl.u32 %v872, 7
    %v874 = vsub.s32 0, %v873
    %v875 = vrot.slane %v859, %v874
    %v876 = vmul.f32 %v79, %v875
    %v877 = vmul.f32 %v83, %v875
    %v878 = vmul.f32 %v87, %v875
    %v879 = vmul.f32 %v91, %v875
    %v880 = vmul.f32 %v95, %v875
    %v881 = vmul.f32 %v99, %v875
    %v882 = vmul.f32 %v103, %v875
    %v883 = vmul.f32 %v107, %v875
    %v884 = vadd.f32 %v864, %v876
    %v885 = vadd.f32 %v865, %v877
    %v886 = vadd.f32 %v866, %v878
    %v887 = vadd.f32 %v867, %v879
    %v888 = vadd.f32 %v868, %v880
    %v889 = vadd.f32 %v869, %v881
    %v890 = vadd.f32 %v870, %v882
    %v891 = vadd.f32 %v871, %v883
    %v892 = vadd.f32 %v884, %v131
    %v893 = vadd.f32 %v885, %v135
    %v894 = vadd.f32 %v886, %v139
    %v895 = vadd.f32 %v887, %v143
    %v896 = vadd.f32 %v888, %v147
    %v897 = vadd.f32 %v889, %v151
    %v898 = vadd.f32 %v890, %v155
    %v899 = vadd.f32 %v891, %v159
    %v900 = vmax.f32 %v892, 0.0
    %v901 = vmax.f32 %v893, 0.0
    %v902 = vmax.f32 %v894, 0.0
    %v903 = vmax.f32 %v895, 0.0
    %v904 = vmax.f32 %v896, 0.0
    %v905 = vmax.f32 %v897, 0.0
    %v906 = vmax.f32 %v898, 0.0
    %v907 = vmax.f32 %v899, 0.0
    %908 = vmatprep.subr.mxu0 0.0
    %909 = vmatpush1.msra.mxu0 %v900
    %910 = vmatprep.subr.mxu0 0.0
    %911 = vmatpush1.msra.mxu0 %v901
    %912 = vmatprep.subr.mxu0 0.0
    %913 = vmatpush1.msra.mxu0 %v902
    %914 = vmatprep.subr.mxu0 0.0
    %915 = vmatpush1.msra.mxu0 %v903
    %916 = vmatprep.subr.mxu0 0.0
    %917 = vmatpush1.msra.mxu0 %v904
    %918 = vmatprep.subr.mxu0 0.0
    %919 = vmatpush1.msra.mxu0 %v905
    %920 = vmatprep.subr.mxu0 0.0
    %921 = vmatpush1.msra.mxu0 %v906
    %922 = vmatprep.subr.mxu0 0.0
    %923 = vmatpush1.msra.mxu0 %v907
    %924 = vmatprep.subr.mxu0 0.0
    %925 = vmatpush1.msra.mxu0 0.0
    %926 = vmatprep.subr.mxu0 0.0
    %927 = vmatpush1.msra.mxu0 0.0
    %928 = vmatprep.subr.mxu0 0.0
    %929 = vmatpush1.msra.mxu0 0.0
    %930 = vmatprep.subr.mxu0 0.0
    %931 = vmatpush1.msra.mxu0 0.0
    %932 = vmatprep.subr.mxu0 0.0
    %933 = vmatpush1.msra.mxu0 0.0
    %934 = vmatprep.subr.mxu0 0.0
    %935 = vmatpush1.msra.mxu0 0.0
    %936 = vmatprep.subr.mxu0 0.0
    %937 = vmatpush1.msra.mxu0 0.0
    %938 = vmatprep.subr.mxu0 0.0
    %939 = vmatpush1.msra.mxu0 0.0
    %940 = vmatprep.subr.mxu0 0.0
    %941 = vmatpush1.msra.mxu0 0.0
    %942 = vmatprep.subr.mxu0 0.0
    %943 = vmatpush1.msra.mxu0 0.0
    %944 = vmatprep.subr.mxu0 0.0
    %945 = vmatpush1.msra.mxu0 0.0
    %946 = vmatprep.subr.mxu0 0.0
    %947 = vmatpush1.msra.mxu0 0.0
    %948 = vmatprep.subr.mxu0 0.0
    %949 = vmatpush1.msra.mxu0 0.0
    %950 = vmatprep.subr.mxu0 0.0
    %951 = vmatpush1.msra.mxu0 0.0
    %952 = vmatprep.subr.mxu0 0.0
    %953 = vmatpush1.msra.mxu0 0.0
    %954 = vmatprep.subr.mxu0 0.0
    %955 = vmatpush1.msra.mxu0 0.0
    %956 = vmatprep.subr.mxu0 0.0
    %957 = vmatpush1.msra.mxu0 0.0
    %958 = vmatprep.subr.mxu0 0.0
    %959 = vmatpush1.msra.mxu0 0.0
    %960 = vmatprep.subr.mxu0 0.0
    %961 = vmatpush1.msra.mxu0 0.0
    %962 = vmatprep.subr.mxu0 0.0
    %963 = vmatpush1.msra.mxu0 0.0
    %964 = vmatprep.subr.mxu0 0.0
    %965 = vmatpush1.msra.mxu0 0.0
    %966 = vmatprep.subr.mxu0 0.0
    %967 = vmatpush1.msra.mxu0 0.0
    %968 = vmatprep.subr.mxu0 0.0
    %969 = vmatpush1.msra.mxu0 0.0
    %970 = vmatprep.subr.mxu0 0.0
    %971 = vmatpush1.msra.mxu0 0.0
    %972 = vmatprep.mubr.f32.mxu0 0.0
    %973 = vmatmul.mubr.f32.gmra.mrb[0].mxu0 %v187
    %v974 = vpop.f32.mrb[0].mxu0
    %v975 = vadd.f32 %v179, %v974
    %v976 = vpop.f32.mrb[0].mxu0
    %977 = vmatprep.mubr.f32.mxu0 0.0
    %978 = vmatmul.mubr.f32.gmra.mrb[0].mxu0 %v190
    %v979 = vpop.f32.mrb[0].mxu0
    %v980 = vadd.f32 %v183, %v979
    %v981 = vpop.f32.mrb[0].mxu0
    %982 = vdwg.mxu0
    %v983 = vmax.f32 %v975, 0.0
    %v984 = vmax.f32 %v980, 0.0
    %v985 = vmul.f32 %v271, %v983
    %v986 = vmul.f32 %v275, %v984
    %v987 = vadd.f32 %v985, %v986
    %v988 = vrot.slane %v987, 4
    %v989 = vadd.f32 %v987, %v988
    %v990 = vrot.slane %v989, 2
    %v991 = vadd.f32 %v989, %v990
    %v992 = vrot.slane %v991, 1
    %v993 = vadd.f32 %v991, %v992
    %v994 = vadd.f32 %v993, %v289
    %s995 = scalar_lea.vmem [#allocation2], 5
    %996 = vst.msk [vmem:[%s995] sm:$0x1] %vm295, %v994
    %s997 = scalar_lea.vmem %s0, 12
    %v998 = vld [vmem:[%s997] sm:$0x1]
    %v999 = vld [vmem:[%s997 + $0x1] sm:$0x1]
    %v1000 = vlaneseq
    %v1001 = vshrl.u32 %v1000, 7
    %v1002 = vsub.s32 0, %v1001
    %v1003 = vrot.slane %v998, %v1002
    %v1004 = vmul.f32 %v28, %v1003
    %v1005 = vmul.f32 %v33, %v1003
    %v1006 = vmul.f32 %v38, %v1003
    %v1007 = vmul.f32 %v43, %v1003
    %v1008 = vmul.f32 %v48, %v1003
    %v1009 = vmul.f32 %v53, %v1003
    %v1010 = vmul.f32 %v58, %v1003
    %v1011 = vmul.f32 %v63, %v1003
    %v1012 = vlaneseq
    %v1013 = vshrl.u32 %v1012, 7
    %v1014 = vsub.s32 0, %v1013
    %v1015 = vrot.slane %v999, %v1014
    %v1016 = vmul.f32 %v79, %v1015
    %v1017 = vmul.f32 %v83, %v1015
    %v1018 = vmul.f32 %v87, %v1015
    %v1019 = vmul.f32 %v91, %v1015
    %v1020 = vmul.f32 %v95, %v1015
    %v1021 = vmul.f32 %v99, %v1015
    %v1022 = vmul.f32 %v103, %v1015
    %v1023 = vmul.f32 %v107, %v1015
    %v1024 = vadd.f32 %v1004, %v1016
    %v1025 = vadd.f32 %v1005, %v1017
    %v1026 = vadd.f32 %v1006, %v1018
    %v1027 = vadd.f32 %v1007, %v1019
    %v1028 = vadd.f32 %v1008, %v1020
    %v1029 = vadd.f32 %v1009, %v1021
    %v1030 = vadd.f32 %v1010, %v1022
    %v1031 = vadd.f32 %v1011, %v1023
    %v1032 = vadd.f32 %v1024, %v131
    %v1033 = vadd.f32 %v1025, %v135
    %v1034 = vadd.f32 %v1026, %v139
    %v1035 = vadd.f32 %v1027, %v143
    %v1036 = vadd.f32 %v1028, %v147
    %v1037 = vadd.f32 %v1029, %v151
    %v1038 = vadd.f32 %v1030, %v155
    %v1039 = vadd.f32 %v1031, %v159
    %v1040 = vmax.f32 %v1032, 0.0
    %v1041 = vmax.f32 %v1033, 0.0
    %v1042 = vmax.f32 %v1034, 0.0
    %v1043 = vmax.f32 %v1035, 0.0
    %v1044 = vmax.f32 %v1036, 0.0
    %v1045 = vmax.f32 %v1037, 0.0
    %v1046 = vmax.f32 %v1038, 0.0
    %v1047 = vmax.f32 %v1039, 0.0
    %1048 = vmatprep.subr.mxu0 0.0
    %1049 = vmatpush1.msra.mxu0 %v1040
    %1050 = vmatprep.subr.mxu0 0.0
    %1051 = vmatpush1.msra.mxu0 %v1041
    %1052 = vmatprep.subr.mxu0 0.0
    %1053 = vmatpush1.msra.mxu0 %v1042
    %1054 = vmatprep.subr.mxu0 0.0
    %1055 = vmatpush1.msra.mxu0 %v1043
    %1056 = vmatprep.subr.mxu0 0.0
    %1057 = vmatpush1.msra.mxu0 %v1044
    %1058 = vmatprep.subr.mxu0 0.0
    %1059 = vmatpush1.msra.mxu0 %v1045
    %1060 = vmatprep.subr.mxu0 0.0
    %1061 = vmatpush1.msra.mxu0 %v1046
    %1062 = vmatprep.subr.mxu0 0.0
    %1063 = vmatpush1.msra.mxu0 %v1047
    %1064 = vmatprep.subr.mxu0 0.0
    %1065 = vmatpush1.msra.mxu0 0.0
    %1066 = vmatprep.subr.mxu0 0.0
    %1067 = vmatpush1.msra.mxu0 0.0
    %1068 = vmatprep.subr.mxu0 0.0
    %1069 = vmatpush1.msra.mxu0 0.0
    %1070 = vmatprep.subr.mxu0 0.0
    %1071 = vmatpush1.msra.mxu0 0.0
    %1072 = vmatprep.subr.mxu0 0.0
    %1073 = vmatpush1.msra.mxu0 0.0
    %1074 = vmatprep.subr.mxu0 0.0
    %1075 = vmatpush1.msra.mxu0 0.0
    %1076 = vmatprep.subr.mxu0 0.0
    %1077 = vmatpush1.msra.mxu0 0.0
    %1078 = vmatprep.subr.mxu0 0.0
    %1079 = vmatpush1.msra.mxu0 0.0
    %1080 = vmatprep.subr.mxu0 0.0
    %1081 = vmatpush1.msra.mxu0 0.0
    %1082 = vmatprep.subr.mxu0 0.0
    %1083 = vmatpush1.msra.mxu0 0.0
    %1084 = vmatprep.subr.mxu0 0.0
    %1085 = vmatpush1.msra.mxu0 0.0
    %1086 = vmatprep.subr.mxu0 0.0
    %1087 = vmatpush1.msra.mxu0 0.0
    %1088 = vmatprep.subr.mxu0 0.0
    %1089 = vmatpush1.msra.mxu0 0.0
    %1090 = vmatprep.subr.mxu0 0.0
    %1091 = vmatpush1.msra.mxu0 0.0
    %1092 = vmatprep.subr.mxu0 0.0
    %1093 = vmatpush1.msra.mxu0 0.0
    %1094 = vmatprep.subr.mxu0 0.0
    %1095 = vmatpush1.msra.mxu0 0.0
    %1096 = vmatprep.subr.mxu0 0.0
    %1097 = vmatpush1.msra.mxu0 0.0
    %1098 = vmatprep.subr.mxu0 0.0
    %1099 = vmatpush1.msra.mxu0 0.0
    %1100 = vmatprep.subr.mxu0 0.0
    %1101 = vmatpush1.msra.mxu0 0.0
    %1102 = vmatprep.subr.mxu0 0.0
    %1103 = vmatpush1.msra.mxu0 0.0
    %1104 = vmatprep.subr.mxu0 0.0
    %1105 = vmatpush1.msra.mxu0 0.0
    %1106 = vmatprep.subr.mxu0 0.0
    %1107 = vmatpush1.msra.mxu0 0.0
    %1108 = vmatprep.subr.mxu0 0.0
    %1109 = vmatpush1.msra.mxu0 0.0
    %1110 = vmatprep.subr.mxu0 0.0
    %1111 = vmatpush1.msra.mxu0 0.0
    %1112 = vmatprep.mubr.f32.mxu0 0.0
    %1113 = vmatmul.mubr.f32.gmra.mrb[0].mxu0 %v187
    %v1114 = vpop.f32.mrb[0].mxu0
    %v1115 = vadd.f32 %v179, %v1114
    %v1116 = vpop.f32.mrb[0].mxu0
    %1117 = vmatprep.mubr.f32.mxu0 0.0
    %1118 = vmatmul.mubr.f32.gmra.mrb[0].mxu0 %v190
    %v1119 = vpop.f32.mrb[0].mxu0
    %v1120 = vadd.f32 %v183, %v1119
    %v1121 = vpop.f32.mrb[0].mxu0
    %1122 = vdwg.mxu0
    %v1123 = vmax.f32 %v1115, 0.0
    %v1124 = vmax.f32 %v1120, 0.0
    %v1125 = vmul.f32 %v271, %v1123
    %v1126 = vmul.f32 %v275, %v1124
    %v1127 = vadd.f32 %v1125, %v1126
    %v1128 = vrot.slane %v1127, 4
    %v1129 = vadd.f32 %v1127, %v1128
    %v1130 = vrot.slane %v1129, 2
    %v1131 = vadd.f32 %v1129, %v1130
    %v1132 = vrot.slane %v1131, 1
    %v1133 = vadd.f32 %v1131, %v1132
    %v1134 = vadd.f32 %v1133, %v289
    %s1135 = scalar_lea.vmem [#allocation2], 6
    %1136 = vst.msk [vmem:[%s1135] sm:$0x1] %vm295, %v1134
    %s1137 = scalar_lea.vmem %s0, 14
    %v1138 = vld [vmem:[%s1137] sm:$0x1]
    %v1139 = vld [vmem:[%s1137 + $0x1] sm:$0x1]
    %v1140 = vlaneseq
    %v1141 = vshrl.u32 %v1140, 7
    %v1142 = vsub.s32 0, %v1141
    %v1143 = vrot.slane %v1138, %v1142
    %v1144 = vmul.f32 %v28, %v1143
    %v1145 = vmul.f32 %v33, %v1143
    %v1146 = vmul.f32 %v38, %v1143
    %v1147 = vmul.f32 %v43, %v1143
    %v1148 = vmul.f32 %v48, %v1143
    %v1149 = vmul.f32 %v53, %v1143
    %v1150 = vmul.f32 %v58, %v1143
    %v1151 = vmul.f32 %v63, %v1143
    %v1152 = vlaneseq
    %v1153 = vshrl.u32 %v1152, 7
    %v1154 = vsub.s32 0, %v1153
    %v1155 = vrot.slane %v1139, %v1154
    %v1156 = vmul.f32 %v79, %v1155
    %v1157 = vmul.f32 %v83, %v1155
    %v1158 = vmul.f32 %v87, %v1155
    %v1159 = vmul.f32 %v91, %v1155
    %v1160 = vmul.f32 %v95, %v1155
    %v1161 = vmul.f32 %v99, %v1155
    %v1162 = vmul.f32 %v103, %v1155
    %v1163 = vmul.f32 %v107, %v1155
    %v1164 = vadd.f32 %v1144, %v1156
    %v1165 = vadd.f32 %v1145, %v1157
    %v1166 = vadd.f32 %v1146, %v1158
    %v1167 = vadd.f32 %v1147, %v1159
    %v1168 = vadd.f32 %v1148, %v1160
    %v1169 = vadd.f32 %v1149, %v1161
    %v1170 = vadd.f32 %v1150, %v1162
    %v1171 = vadd.f32 %v1151, %v1163
    %v1172 = vadd.f32 %v1164, %v131
    %v1173 = vadd.f32 %v1165, %v135
    %v1174 = vadd.f32 %v1166, %v139
    %v1175 = vadd.f32 %v1167, %v143
    %v1176 = vadd.f32 %v1168, %v147
    %v1177 = vadd.f32 %v1169, %v151
    %v1178 = vadd.f32 %v1170, %v155
    %v1179 = vadd.f32 %v1171, %v159
    %v1180 = vmax.f32 %v1172, 0.0
    %v1181 = vmax.f32 %v1173, 0.0
    %v1182 = vmax.f32 %v1174, 0.0
    %v1183 = vmax.f32 %v1175, 0.0
    %v1184 = vmax.f32 %v1176, 0.0
    %v1185 = vmax.f32 %v1177, 0.0
    %v1186 = vmax.f32 %v1178, 0.0
    %v1187 = vmax.f32 %v1179, 0.0
    %1188 = vmatprep.subr.mxu0 0.0
    %1189 = vmatpush1.msra.mxu0 %v1180
    %1190 = vmatprep.subr.mxu0 0.0
    %1191 = vmatpush1.msra.mxu0 %v1181
    %1192 = vmatprep.subr.mxu0 0.0
    %1193 = vmatpush1.msra.mxu0 %v1182
    %1194 = vmatprep.subr.mxu0 0.0
    %1195 = vmatpush1.msra.mxu0 %v1183
    %1196 = vmatprep.subr.mxu0 0.0
    %1197 = vmatpush1.msra.mxu0 %v1184
    %1198 = vmatprep.subr.mxu0 0.0
    %1199 = vmatpush1.msra.mxu0 %v1185
    %1200 = vmatprep.subr.mxu0 0.0
    %1201 = vmatpush1.msra.mxu0 %v1186
    %1202 = vmatprep.subr.mxu0 0.0
    %1203 = vmatpush1.msra.mxu0 %v1187
    %1204 = vmatprep.subr.mxu0 0.0
    %1205 = vmatpush1.msra.mxu0 0.0
    %1206 = vmatprep.subr.mxu0 0.0
    %1207 = vmatpush1.msra.mxu0 0.0
    %1208 = vmatprep.subr.mxu0 0.0
    %1209 = vmatpush1.msra.mxu0 0.0
    %1210 = vmatprep.subr.mxu0 0.0
    %1211 = vmatpush1.msra.mxu0 0.0
    %1212 = vmatprep.subr.mxu0 0.0
    %1213 = vmatpush1.msra.mxu0 0.0
    %1214 = vmatprep.subr.mxu0 0.0
    %1215 = vmatpush1.msra.mxu0 0.0
    %1216 = vmatprep.subr.mxu0 0.0
    %1217 = vmatpush1.msra.mxu0 0.0
    %1218 = vmatprep.subr.mxu0 0.0
    %1219 = vmatpush1.msra.mxu0 0.0
    %1220 = vmatprep.subr.mxu0 0.0
    %1221 = vmatpush1.msra.mxu0 0.0
    %1222 = vmatprep.subr.mxu0 0.0
    %1223 = vmatpush1.msra.mxu0 0.0
    %1224 = vmatprep.subr.mxu0 0.0
    %1225 = vmatpush1.msra.mxu0 0.0
    %1226 = vmatprep.subr.mxu0 0.0
    %1227 = vmatpush1.msra.mxu0 0.0
    %1228 = vmatprep.subr.mxu0 0.0
    %1229 = vmatpush1.msra.mxu0 0.0
    %1230 = vmatprep.subr.mxu0 0.0
    %1231 = vmatpush1.msra.mxu0 0.0
    %1232 = vmatprep.subr.mxu0 0.0
    %1233 = vmatpush1.msra.mxu0 0.0
    %1234 = vmatprep.subr.mxu0 0.0
    %1235 = vmatpush1.msra.mxu0 0.0
    %1236 = vmatprep.subr.mxu0 0.0
    %1237 = vmatpush1.msra.mxu0 0.0
    %1238 = vmatprep.subr.mxu0 0.0
    %1239 = vmatpush1.msra.mxu0 0.0
    %1240 = vmatprep.subr.mxu0 0.0
    %1241 = vmatpush1.msra.mxu0 0.0
    %1242 = vmatprep.subr.mxu0 0.0
    %1243 = vmatpush1.msra.mxu0 0.0
    %1244 = vmatprep.subr.mxu0 0.0
    %1245 = vmatpush1.msra.mxu0 0.0
    %1246 = vmatprep.subr.mxu0 0.0
    %1247 = vmatpush1.msra.mxu0 0.0
    %1248 = vmatprep.subr.mxu0 0.0
    %1249 = vmatpush1.msra.mxu0 0.0
    %1250 = vmatprep.subr.mxu0 0.0
    %1251 = vmatpush1.msra.mxu0 0.0
    %1252 = vmatprep.mubr.f32.mxu0 0.0
    %1253 = vmatmul.mubr.f32.gmra.mrb[0].mxu0 %v187
    %v1254 = vpop.f32.mrb[0].mxu0
    %v1255 = vadd.f32 %v179, %v1254
    %v1256 = vpop.f32.mrb[0].mxu0
    %1257 = vmatprep.mubr.f32.mxu0 0.0
    %1258 = vmatmul.mubr.f32.gmra.mrb[0].mxu0 %v190
    %v1259 = vpop.f32.mrb[0].mxu0
    %v1260 = vadd.f32 %v183, %v1259
    %v1261 = vpop.f32.mrb[0].mxu0
    %1262 = vdwg.mxu0
    %v1263 = vmax.f32 %v1255, 0.0
    %v1264 = vmax.f32 %v1260, 0.0
    %v1265 = vmul.f32 %v271, %v1263
    %v1266 = vmul.f32 %v275, %v1264
    %v1267 = vadd.f32 %v1265, %v1266
    %v1268 = vrot.slane %v1267, 4
    %v1269 = vadd.f32 %v1267, %v1268
    %v1270 = vrot.slane %v1269, 2
    %v1271 = vadd.f32 %v1269, %v1270
    %v1272 = vrot.slane %v1271, 1
    %v1273 = vadd.f32 %v1271, %v1272
    %v1274 = vadd.f32 %v1273, %v289
    %s1275 = scalar_lea.vmem [#allocation2], 7
    %1276 = vst.msk [vmem:[%s1275] sm:$0x1] %vm295, %v1274
    // Predicated region
    $region10: #{tpu_custom_call.1} parent=1 // pred_check
      _
    $region11: #{tpu_custom_call.1} parent=1 // pred_check_branch
      %1278 = sbr.rel (0) target = $region13
    $region12: #{tpu_custom_call.1} parent=1 // pred_region
      %s1280 = ssub.s32 128, 128
      %1281 = vsyncadd [#allocation3], %s1280
      %s1283 = sshll.u32 [#allocation2], 4
      %s1284 = int_to_ptr.vmem [resolvable:$true] %s1283
      %1286 = dma.vmem_to_hbm [thread:$0]  %s1284, 128, %s2, [#allocation3]
    $region13: #{tpu_custom_call.1} parent=1 // pred_fallthru
      _
    // Predicated region
    $region14: #{tpu_custom_call.1} parent=1 // pred_check
      _
    $region15: #{tpu_custom_call.1} parent=1 // pred_check_branch
      %1288 = sbr.rel (0) target = $region17
    $region16: #{tpu_custom_call.1} parent=1 // pred_region
      %1289 = dma.done [#allocation3], 128
    $region17: #{tpu_custom_call.1} parent=1 // pred_fallthru
      _
    %1290 = vsyncpa [#allocation3], 1

</llo_original>
